<compile_context>
chip_gen: v7x
topology: tpu7x:2x2x1
jax: 0.10.0
libtpu: 0.0.40
codegen_flags: <defaults>
</compile_context>

<pallas_src>
import functools

import jax
import jax.numpy as jnp
from jax.experimental import pallas as pl
from jax.experimental.pallas import tpu as pltpu

# ----------------------------- config (matches Block.__init__) ----------------
B = 2          # batch
S = 8          # sequence length
DIM = 32       # embed dim
HEADS = 4      # attention heads
FF_DIM = 64    # feed-forward hidden dim
EPS = 1e-6     # LayerNorm eps
ATT_SCALE = 'per_head'     # -> scale = DIM // HEADS
GELU_TYPE = 'exact'        # -> F.gelu (erf form)

HEAD_DIM = DIM // HEADS
SCALE = float(DIM // HEADS) if ATT_SCALE == 'per_head' else float(DIM)

QKV_PAD = 128   # fused q|k|v output lanes (3*DIM = 96 padded to one full lane tile)
FF_PAD = 128    # FFN hidden lanes (64 padded to one full lane tile)


# ----------------------------- in-kernel math helpers --------------------------
def _layernorm(x, g, b, eps):
    mu = jnp.mean(x, axis=-1, keepdims=True)
    var = jnp.mean((x - mu) ** 2, axis=-1, keepdims=True)
    return (x - mu) * jax.lax.rsqrt(var + eps) * g + b


def _erf(x):
    # Abramowitz & Stegun 7.1.26 rational approximation, |abs err| < 1.5e-7.
    # Avoids lax.erf (no guaranteed Mosaic lowering); uses only exp / mul / add / where.
    a1, a2, a3, a4, a5 = 0.254829592, -0.284496736, 1.421413741, -1.453152027, 1.061405429
    p = 0.3275911
    ax = jnp.abs(x)
    t = 1.0 / (1.0 + p * ax)
    poly = ((((a5 * t + a4) * t + a3) * t + a2) * t + a1) * t
    y = 1.0 - poly * jnp.exp(-ax * ax)
    return jnp.where(x >= 0.0, y, -y)


def _gelu_exact(x):
    # PyTorch F.gelu default (exact, erf form): 0.5 * x * (1 + erf(x / sqrt(2)))
    return 0.5 * x * (1.0 + _erf(x * 0.7071067811865476))


# ----------------------------- Pallas kernel ----------------------------------
def block_kernel(x_ref, wqkv_ref, wo_ref, w1_ref, w2_ref, vecs_ref, bias_ref,
                 out_ref, *, heads, head_dim, dim, eps):
    x = x_ref[...]                                                   # (BS, D)

    # ---- unpack the (8, 128) parameter-row pack (static slices) ----
    vec = vecs_ref[...]
    bqkv = vec[0:1, :]                 # (1, 128) fused qkv bias (q already scaled)
    b1 = vec[1:2, :]                   # (1, 128) FFN hidden bias (padded)
    n1g, n1b = vec[2:3, 0:dim], vec[3:4, 0:dim]
    n2g, n2b = vec[4:5, 0:dim], vec[5:6, 0:dim]
    bo, b2 = vec[6:7, 0:dim], vec[7:8, 0:dim]

    # ---- norm1 ----
    h = _layernorm(x, n1g, n1b, eps)

    # ---- fused QKV projection (single MXU push, 128-lane dense output).
    #      1/sqrt(scale) is already folded into Wq / bq on the host. ----
    qkv = jnp.dot(h, wqkv_ref[...], preferred_element_type=jnp.float32) + bqkv

    # ---- head-batched attention over all B*S rows at once ----
    def heads_of(base):                                              # -> (H, BS, hd)
        return jnp.stack(
            [qkv[:, base + i * head_dim: base + (i + 1) * head_dim] for i in range(heads)],
            axis=0)

    qh = heads_of(0)
    kh = heads_of(dim)
    vh = heads_of(2 * dim)

    s = jnp.einsum('hqd,hkd->hqk', qh, kh,
                   preferred_element_type=jnp.float32)               # (H, BS, BS)
    # block-diagonal batch mask (0 within a batch, -1e30 across batches): exp() -> exactly 0,
    # so the single batched matmul reproduces per-batch attention exactly.
    s = s + bias_ref[...]
    s = s - jnp.max(s, axis=-1, keepdims=True)
    p = jnp.exp(s)
    p = p * pl.reciprocal(jnp.sum(p, axis=-1, keepdims=True), approx=True)
    ah = jnp.einsum('hqk,hkd->hqd', p, vh,
                    preferred_element_type=jnp.float32)              # (H, BS, hd)
    attn = jnp.concatenate([ah[i] for i in range(heads)], axis=-1)   # (BS, D)

    # ---- output projection + residual ----
    x1 = x + jnp.dot(attn, wo_ref[...], preferred_element_type=jnp.float32) + bo

    # ---- norm2 + FFN (exact erf GELU) + residual ----
    h2 = _layernorm(x1, n2g, n2b, eps)
    f1 = jnp.dot(h2, w1_ref[...], preferred_element_type=jnp.float32) + b1   # (BS, 128)
    f1 = _gelu_exact(f1)
    f2 = jnp.dot(f1, w2_ref[...], preferred_element_type=jnp.float32) + b2   # (BS, D)

    out_ref[...] = x1 + f2


# ----------------------------- host-side (one-time) weight prep ----------------
def prepare_params(p):
    """Fuse QKV (scale folded into Wq), pad to lane-dense shapes, pack small rows, build mask."""
    inv = 1.0 / (SCALE ** 0.5)
    wqkv = jnp.concatenate([p['wq'] * inv, p['wk'], p['wv']], axis=1)      # (D, 3D)
    bqkv = jnp.concatenate([p['bq'] * inv, p['bk'], p['bv']], axis=1)      # (1, 3D)
    wqkv = jnp.pad(wqkv, ((0, 0), (0, QKV_PAD - 3 * DIM)))                 # (D, 128)
    bqkv = jnp.pad(bqkv, ((0, 0), (0, QKV_PAD - 3 * DIM)))                 # (1, 128)

    # FFN hidden padded 64 -> 128: zero cols in W1/b1, zero rows in W2 (exact same math).
    w1 = jnp.pad(p['w1'], ((0, 0), (0, FF_PAD - FF_DIM)))                  # (D, 128)
    b1 = jnp.pad(p['b1'], ((0, 0), (0, FF_PAD - FF_DIM)))                  # (1, 128)
    w2 = jnp.pad(p['w2'], ((0, FF_PAD - FF_DIM), (0, 0)))                  # (128, D)

    # pack all (1, *) parameter rows into one (8, 128) array -> one DMA instead of eight
    pad_row = lambda r: jnp.pad(r, ((0, 0), (0, 128 - DIM)))
    vecs = jnp.concatenate([
        bqkv, b1,
        pad_row(p['n1g']), pad_row(p['n1b']),
        pad_row(p['n2g']), pad_row(p['n2b']),
        pad_row(p['bo']), pad_row(p['b2']),
    ], axis=0).astype(jnp.float32)                                         # (8, 128)

    # additive attention bias: 0 within the same batch, -1e30 across batches
    rows = jnp.arange(B * S) // S
    bias = jnp.where(rows[:, None] == rows[None, :], 0.0, -1e30).astype(jnp.float32)  # (BS, BS)

    return {'wqkv': wqkv, 'wo': p['wo'], 'w1': w1, 'w2': w2,
            'vecs': vecs, 'attn_bias': bias}


# ----------------------------- wrapper -----------------------------------------
@jax.jit
def vit_block(x, kp):
    """x: (B, S, D) float32; kp: prepared params from prepare_params()."""
    Bx, Sx, Dx = x.shape
    BS = Bx * Sx

    kernel = functools.partial(block_kernel, heads=HEADS, head_dim=HEAD_DIM,
                               dim=Dx, eps=EPS)
    vmem = pl.BlockSpec(memory_space=pltpu.MemorySpace.VMEM)

    # Single kernel invocation (no grid): the whole problem fits trivially in VMEM and is
    # latency/overhead bound, so per-step grid overhead is the enemy at these shapes.
    out = pl.pallas_call(
        kernel,
        out_shape=jax.ShapeDtypeStruct((BS, Dx), x.dtype),
        in_specs=[vmem] * 7,
        out_specs=vmem,
    )(x.reshape(BS, Dx),
      kp['wqkv'], kp['wo'], kp['w1'], kp['w2'], kp['vecs'], kp['attn_bias'])

    return out.reshape(Bx, Sx, Dx)


# ----------------------------- pure-JAX reference ------------------------------
def reference_block(x, p):
    def ln(x, g, b):
        mu = jnp.mean(x, axis=-1, keepdims=True)
        var = jnp.mean((x - mu) ** 2, axis=-1, keepdims=True)
        return (x - mu) / jnp.sqrt(var + EPS) * g + b

    h = ln(x, p['n1g'], p['n1b'])
    q = h @ p['wq'] + p['bq']
    k = h @ p['wk'] + p['bk']
    v = h @ p['wv'] + p['bv']

    def split(t):  # (B,S,D) -> (B,H,S,hd)
        return t.reshape(B, S, HEADS, HEAD_DIM).transpose(0, 2, 1, 3)

    qh, kh, vh = split(q), split(k), split(v)
    scores = jnp.einsum('bhqd,bhkd->bhqk', qh, kh) / (SCALE ** 0.5)
    scores = jax.nn.softmax(scores, axis=-1)
    attn = jnp.einsum('bhqk,bhkd->bhqd', scores, vh).transpose(0, 2, 1, 3).reshape(B, S, DIM)
    x1 = x + attn @ p['wo'] + p['bo']
    h2 = ln(x1, p['n2g'], p['n2b'])
    ff = jax.nn.gelu(h2 @ p['w1'] + p['b1'], approximate=False) @ p['w2'] + p['b2']
    return x1 + ff


# ----------------------------- deterministic init ------------------------------
def init_params(key):
    ks = jax.random.split(key, 12)
    init = lambda k, shape: (0.05 * jax.random.normal(k, shape)).astype(jnp.float32)
    return {
        'n1g': jnp.ones((1, DIM), jnp.float32),
        'n1b': jnp.zeros((1, DIM), jnp.float32),
        'wq': init(ks[0], (DIM, DIM)),   'bq': init(ks[1], (1, DIM)),
        'wk': init(ks[2], (DIM, DIM)),   'bk': init(ks[3], (1, DIM)),
        'wv': init(ks[4], (DIM, DIM)),   'bv': init(ks[5], (1, DIM)),
        'wo': init(ks[6], (DIM, DIM)),   'bo': init(ks[7], (1, DIM)),
        'n2g': jnp.ones((1, DIM), jnp.float32),
        'n2b': jnp.zeros((1, DIM), jnp.float32),
        'w1': init(ks[8], (DIM, FF_DIM)), 'b1': init(ks[9], (1, FF_DIM)),
        'w2': init(ks[10], (FF_DIM, DIM)), 'b2': init(ks[11], (1, DIM)),
    }


if __name__ == "__main__":
    key = jax.random.PRNGKey(0)
    kx, kp_key = jax.random.split(key)
    x = jax.random.normal(kx, (B, S, DIM), dtype=jnp.float32)
    params = init_params(kp_key)
    kparams = prepare_params(params)   # one-time weight fusion / padding / packing

    out = vit_block(x, kparams)
    out = jax.block_until_ready(out)

    ref = reference_block(x, params)
    assert out.shape == (B, S, DIM)
    err = float(jnp.max(jnp.abs(out - ref)))
    # 2e-3 tolerance: softmax denominator uses the hardware approximate reciprocal (EUP);
    # the in-kernel erf polynomial contributes < 1e-6.
    assert err < 2e-3, f"mismatch vs pure-JAX reference: {err}"

    print("KERNEL_OK")
</pallas_src>

<mosaic_0001>
module attributes {stable_mosaic.version = 11 : i64} {
  func.func @block_kernel(%arg0: memref<16x32xf32, #tpu.memory_space<vmem>>, %arg1: memref<32x128xf32, #tpu.memory_space<vmem>>, %arg2: memref<32x32xf32, #tpu.memory_space<vmem>>, %arg3: memref<32x128xf32, #tpu.memory_space<vmem>>, %arg4: memref<128x32xf32, #tpu.memory_space<vmem>>, %arg5: memref<8x128xf32, #tpu.memory_space<vmem>>, %arg6: memref<16x16xf32, #tpu.memory_space<vmem>>, %arg7: memref<16x32xf32, #tpu.memory_space<vmem>>) attributes {dimension_semantics = [], scalar_prefetch = 0 : i64, scratch_operands = 0 : i64, tpu.core_type = #tpu.core_type<tc>} {
    %c0 = arith.constant 0 : index
    %c0_0 = arith.constant 0 : index
    %0 = vector.load %arg0[%c0, %c0_0] : memref<16x32xf32, #tpu.memory_space<vmem>>, vector<16x32xf32>
    %c0_1 = arith.constant 0 : index
    %c0_2 = arith.constant 0 : index
    %1 = vector.load %arg5[%c0_1, %c0_2] : memref<8x128xf32, #tpu.memory_space<vmem>>, vector<8x128xf32>
    %2 = vector.extract_strided_slice %1 {offsets = [0, 0], sizes = [1, 128], strides = [1, 1]} : vector<8x128xf32> to vector<1x128xf32>
    %3 = vector.extract_strided_slice %1 {offsets = [1, 0], sizes = [1, 128], strides = [1, 1]} : vector<8x128xf32> to vector<1x128xf32>
    %4 = vector.extract_strided_slice %1 {offsets = [2, 0], sizes = [1, 32], strides = [1, 1]} : vector<8x128xf32> to vector<1x32xf32>
    %5 = vector.extract_strided_slice %1 {offsets = [3, 0], sizes = [1, 32], strides = [1, 1]} : vector<8x128xf32> to vector<1x32xf32>
    %6 = vector.extract_strided_slice %1 {offsets = [4, 0], sizes = [1, 32], strides = [1, 1]} : vector<8x128xf32> to vector<1x32xf32>
    %7 = vector.extract_strided_slice %1 {offsets = [5, 0], sizes = [1, 32], strides = [1, 1]} : vector<8x128xf32> to vector<1x32xf32>
    %8 = vector.extract_strided_slice %1 {offsets = [6, 0], sizes = [1, 32], strides = [1, 1]} : vector<8x128xf32> to vector<1x32xf32>
    %9 = vector.extract_strided_slice %1 {offsets = [7, 0], sizes = [1, 32], strides = [1, 1]} : vector<8x128xf32> to vector<1x32xf32>
    %cst = arith.constant dense<0.000000e+00> : vector<16xf32>
    %10 = vector.multi_reduction <add>, %0, %cst [1] : vector<16x32xf32> to vector<16xf32>
    %11 = vector.shape_cast %10 : vector<16xf32> to vector<16x1xf32>
    %cst_3 = arith.constant 3.200000e+01 : f32
    %12 = vector.broadcast %cst_3 : f32 to vector<16x1xf32>
    %13 = arith.divf %11, %12 : vector<16x1xf32>
    %14 = vector.broadcast %13 : vector<16x1xf32> to vector<16x32xf32>
    %15 = arith.subf %0, %14 : vector<16x32xf32>
    %16 = arith.mulf %15, %15 : vector<16x32xf32>
    %cst_4 = arith.constant dense<0.000000e+00> : vector<16xf32>
    %17 = vector.multi_reduction <add>, %16, %cst_4 [1] : vector<16x32xf32> to vector<16xf32>
    %18 = vector.shape_cast %17 : vector<16xf32> to vector<16x1xf32>
    %cst_5 = arith.constant 3.200000e+01 : f32
    %19 = vector.broadcast %cst_5 : f32 to vector<16x1xf32>
    %20 = arith.divf %18, %19 : vector<16x1xf32>
    %21 = vector.broadcast %13 : vector<16x1xf32> to vector<16x32xf32>
    %22 = arith.subf %0, %21 : vector<16x32xf32>
    %cst_6 = arith.constant 9.99999997E-7 : f32
    %23 = vector.broadcast %cst_6 : f32 to vector<16x1xf32>
    %24 = arith.addf %20, %23 : vector<16x1xf32>
    %25 = math.rsqrt %24 : vector<16x1xf32>
    %26 = vector.broadcast %25 : vector<16x1xf32> to vector<16x32xf32>
    %27 = arith.mulf %22, %26 : vector<16x32xf32>
    %28 = vector.broadcast %4 : vector<1x32xf32> to vector<16x32xf32>
    %29 = arith.mulf %27, %28 : vector<16x32xf32>
    %30 = vector.broadcast %5 : vector<1x32xf32> to vector<16x32xf32>
    %31 = arith.addf %29, %30 : vector<16x32xf32>
    %c0_7 = arith.constant 0 : index
    %c0_8 = arith.constant 0 : index
    %32 = vector.load %arg1[%c0_7, %c0_8] : memref<32x128xf32, #tpu.memory_space<vmem>>, vector<32x128xf32>
    %cst_9 = arith.constant dense<0.000000e+00> : vector<16x128xf32>
    %33 = tpu.matmul %31, %32, %cst_9 {dimension_numbers = #tpu.dot_dimension_numbers<[1], [0], [0], [1], [0, 0, 1, 1], [], []>} : vector<16x32xf32>, vector<32x128xf32>, vector<16x128xf32> -> vector<16x128xf32>
    %34 = vector.broadcast %2 : vector<1x128xf32> to vector<16x128xf32>
    %35 = arith.addf %33, %34 : vector<16x128xf32>
    %36 = vector.extract_strided_slice %35 {offsets = [0, 0], sizes = [16, 8], strides = [1, 1]} : vector<16x128xf32> to vector<16x8xf32>
    %37 = vector.extract_strided_slice %35 {offsets = [0, 8], sizes = [16, 8], strides = [1, 1]} : vector<16x128xf32> to vector<16x8xf32>
    %38 = vector.extract_strided_slice %35 {offsets = [0, 16], sizes = [16, 8], strides = [1, 1]} : vector<16x128xf32> to vector<16x8xf32>
    %39 = vector.extract_strided_slice %35 {offsets = [0, 24], sizes = [16, 8], strides = [1, 1]} : vector<16x128xf32> to vector<16x8xf32>
    %40 = vector.shape_cast %36 : vector<16x8xf32> to vector<1x16x8xf32>
    %41 = vector.shape_cast %37 : vector<16x8xf32> to vector<1x16x8xf32>
    %42 = vector.shape_cast %38 : vector<16x8xf32> to vector<1x16x8xf32>
    %43 = vector.shape_cast %39 : vector<16x8xf32> to vector<1x16x8xf32>
    %44 = tpu.concatenate %40, %41, %42, %43 in 0 : vector<1x16x8xf32>, vector<1x16x8xf32>, vector<1x16x8xf32>, vector<1x16x8xf32> -> vector<4x16x8xf32>
    %45 = vector.extract_strided_slice %35 {offsets = [0, 32], sizes = [16, 8], strides = [1, 1]} : vector<16x128xf32> to vector<16x8xf32>
    %46 = vector.extract_strided_slice %35 {offsets = [0, 40], sizes = [16, 8], strides = [1, 1]} : vector<16x128xf32> to vector<16x8xf32>
    %47 = vector.extract_strided_slice %35 {offsets = [0, 48], sizes = [16, 8], strides = [1, 1]} : vector<16x128xf32> to vector<16x8xf32>
    %48 = vector.extract_strided_slice %35 {offsets = [0, 56], sizes = [16, 8], strides = [1, 1]} : vector<16x128xf32> to vector<16x8xf32>
    %49 = vector.shape_cast %45 : vector<16x8xf32> to vector<1x16x8xf32>
    %50 = vector.shape_cast %46 : vector<16x8xf32> to vector<1x16x8xf32>
    %51 = vector.shape_cast %47 : vector<16x8xf32> to vector<1x16x8xf32>
    %52 = vector.shape_cast %48 : vector<16x8xf32> to vector<1x16x8xf32>
    %53 = tpu.concatenate %49, %50, %51, %52 in 0 : vector<1x16x8xf32>, vector<1x16x8xf32>, vector<1x16x8xf32>, vector<1x16x8xf32> -> vector<4x16x8xf32>
    %54 = vector.extract_strided_slice %35 {offsets = [0, 64], sizes = [16, 8], strides = [1, 1]} : vector<16x128xf32> to vector<16x8xf32>
    %55 = vector.extract_strided_slice %35 {offsets = [0, 72], sizes = [16, 8], strides = [1, 1]} : vector<16x128xf32> to vector<16x8xf32>
    %56 = vector.extract_strided_slice %35 {offsets = [0, 80], sizes = [16, 8], strides = [1, 1]} : vector<16x128xf32> to vector<16x8xf32>
    %57 = vector.extract_strided_slice %35 {offsets = [0, 88], sizes = [16, 8], strides = [1, 1]} : vector<16x128xf32> to vector<16x8xf32>
    %58 = vector.shape_cast %54 : vector<16x8xf32> to vector<1x16x8xf32>
    %59 = vector.shape_cast %55 : vector<16x8xf32> to vector<1x16x8xf32>
    %60 = vector.shape_cast %56 : vector<16x8xf32> to vector<1x16x8xf32>
    %61 = vector.shape_cast %57 : vector<16x8xf32> to vector<1x16x8xf32>
    %62 = tpu.concatenate %58, %59, %60, %61 in 0 : vector<1x16x8xf32>, vector<1x16x8xf32>, vector<1x16x8xf32>, vector<1x16x8xf32> -> vector<4x16x8xf32>
    "tpu.trace_start"() <{level = 10 : i32, message = "hqd,hkd->hqk"}> : () -> ()
    %cst_10 = arith.constant dense<0.000000e+00> : vector<4x16x16xf32>
    %63 = tpu.matmul %44, %53, %cst_10 {dimension_numbers = #tpu.dot_dimension_numbers<[2], [2], [1], [1], [0, 0, 0, 1, 1, 1], [0], [0]>} : vector<4x16x8xf32>, vector<4x16x8xf32>, vector<4x16x16xf32> -> vector<4x16x16xf32>
    "tpu.trace_stop"() : () -> ()
    %c0_11 = arith.constant 0 : index
    %c0_12 = arith.constant 0 : index
    %64 = vector.load %arg6[%c0_11, %c0_12] : memref<16x16xf32, #tpu.memory_space<vmem>>, vector<16x16xf32>
    %65 = vector.shape_cast %64 : vector<16x16xf32> to vector<1x16x16xf32>
    %66 = vector.broadcast %65 : vector<1x16x16xf32> to vector<4x16x16xf32>
    %67 = arith.addf %63, %66 : vector<4x16x16xf32>
    %cst_13 = arith.constant dense<0xFF800000> : vector<4x16xf32>
    %68 = vector.multi_reduction <maximumf>, %67, %cst_13 [2] : vector<4x16x16xf32> to vector<4x16xf32>
    %69 = vector.shape_cast %68 : vector<4x16xf32> to vector<4x16x1xf32>
    %70 = vector.broadcast %69 : vector<4x16x1xf32> to vector<4x16x16xf32>
    %71 = arith.subf %67, %70 : vector<4x16x16xf32>
    %72 = math.exp %71 : vector<4x16x16xf32>
    %cst_14 = arith.constant dense<0.000000e+00> : vector<4x16xf32>
    %73 = vector.multi_reduction <add>, %72, %cst_14 [2] : vector<4x16x16xf32> to vector<4x16xf32>
    %74 = vector.shape_cast %73 : vector<4x16xf32> to vector<4x16x1xf32>
    %75 = tpu.reciprocal %74 {approx = true} : vector<4x16x1xf32> -> vector<4x16x1xf32>
    %76 = vector.broadcast %75 : vector<4x16x1xf32> to vector<4x16x16xf32>
    %77 = arith.mulf %72, %76 : vector<4x16x16xf32>
    "tpu.trace_start"() <{level = 10 : i32, message = "hqk,hkd->hqd"}> : () -> ()
    %cst_15 = arith.constant dense<0.000000e+00> : vector<4x16x8xf32>
    %78 = tpu.matmul %77, %62, %cst_15 {dimension_numbers = #tpu.dot_dimension_numbers<[2], [1], [1], [2], [0, 0, 0, 1, 1, 2], [0], [0]>} : vector<4x16x16xf32>, vector<4x16x8xf32>, vector<4x16x8xf32> -> vector<4x16x8xf32>
    "tpu.trace_stop"() : () -> ()
    %79 = vector.extract_strided_slice %78 {offsets = [0, 0, 0], sizes = [1, 16, 8], strides = [1, 1, 1]} : vector<4x16x8xf32> to vector<1x16x8xf32>
    %80 = vector.shape_cast %79 : vector<1x16x8xf32> to vector<16x8xf32>
    %81 = vector.extract_strided_slice %78 {offsets = [1, 0, 0], sizes = [1, 16, 8], strides = [1, 1, 1]} : vector<4x16x8xf32> to vector<1x16x8xf32>
    %82 = vector.shape_cast %81 : vector<1x16x8xf32> to vector<16x8xf32>
    %83 = vector.extract_strided_slice %78 {offsets = [2, 0, 0], sizes = [1, 16, 8], strides = [1, 1, 1]} : vector<4x16x8xf32> to vector<1x16x8xf32>
    %84 = vector.shape_cast %83 : vector<1x16x8xf32> to vector<16x8xf32>
    %85 = vector.extract_strided_slice %78 {offsets = [3, 0, 0], sizes = [1, 16, 8], strides = [1, 1, 1]} : vector<4x16x8xf32> to vector<1x16x8xf32>
    %86 = vector.shape_cast %85 : vector<1x16x8xf32> to vector<16x8xf32>
    %87 = tpu.concatenate %80, %82, %84, %86 in 1 : vector<16x8xf32>, vector<16x8xf32>, vector<16x8xf32>, vector<16x8xf32> -> vector<16x32xf32>
    %c0_16 = arith.constant 0 : index
    %c0_17 = arith.constant 0 : index
    %88 = vector.load %arg2[%c0_16, %c0_17] : memref<32x32xf32, #tpu.memory_space<vmem>>, vector<32x32xf32>
    %cst_18 = arith.constant dense<0.000000e+00> : vector<16x32xf32>
    %89 = tpu.matmul %87, %88, %cst_18 {dimension_numbers = #tpu.dot_dimension_numbers<[1], [0], [0], [1], [0, 0, 1, 1], [], []>} : vector<16x32xf32>, vector<32x32xf32>, vector<16x32xf32> -> vector<16x32xf32>
    %90 = arith.addf %0, %89 : vector<16x32xf32>
    %91 = vector.broadcast %8 : vector<1x32xf32> to vector<16x32xf32>
    %92 = arith.addf %90, %91 : vector<16x32xf32>
    %cst_19 = arith.constant dense<0.000000e+00> : vector<16xf32>
    %93 = vector.multi_reduction <add>, %92, %cst_19 [1] : vector<16x32xf32> to vector<16xf32>
    %94 = vector.shape_cast %93 : vector<16xf32> to vector<16x1xf32>
    %cst_20 = arith.constant 3.200000e+01 : f32
    %95 = vector.broadcast %cst_20 : f32 to vector<16x1xf32>
    %96 = arith.divf %94, %95 : vector<16x1xf32>
    %97 = vector.broadcast %96 : vector<16x1xf32> to vector<16x32xf32>
    %98 = arith.subf %92, %97 : vector<16x32xf32>
    %99 = arith.mulf %98, %98 : vector<16x32xf32>
    %cst_21 = arith.constant dense<0.000000e+00> : vector<16xf32>
    %100 = vector.multi_reduction <add>, %99, %cst_21 [1] : vector<16x32xf32> to vector<16xf32>
    %101 = vector.shape_cast %100 : vector<16xf32> to vector<16x1xf32>
    %cst_22 = arith.constant 3.200000e+01 : f32
    %102 = vector.broadcast %cst_22 : f32 to vector<16x1xf32>
    %103 = arith.divf %101, %102 : vector<16x1xf32>
    %104 = vector.broadcast %96 : vector<16x1xf32> to vector<16x32xf32>
    %105 = arith.subf %92, %104 : vector<16x32xf32>
    %cst_23 = arith.constant 9.99999997E-7 : f32
    %106 = vector.broadcast %cst_23 : f32 to vector<16x1xf32>
    %107 = arith.addf %103, %106 : vector<16x1xf32>
    %108 = math.rsqrt %107 : vector<16x1xf32>
    %109 = vector.broadcast %108 : vector<16x1xf32> to vector<16x32xf32>
    %110 = arith.mulf %105, %109 : vector<16x32xf32>
    %111 = vector.broadcast %6 : vector<1x32xf32> to vector<16x32xf32>
    %112 = arith.mulf %110, %111 : vector<16x32xf32>
    %113 = vector.broadcast %7 : vector<1x32xf32> to vector<16x32xf32>
    %114 = arith.addf %112, %113 : vector<16x32xf32>
    %c0_24 = arith.constant 0 : index
    %c0_25 = arith.constant 0 : index
    %115 = vector.load %arg3[%c0_24, %c0_25] : memref<32x128xf32, #tpu.memory_space<vmem>>, vector<32x128xf32>
    %cst_26 = arith.constant dense<0.000000e+00> : vector<16x128xf32>
    %116 = tpu.matmul %114, %115, %cst_26 {dimension_numbers = #tpu.dot_dimension_numbers<[1], [0], [0], [1], [0, 0, 1, 1], [], []>} : vector<16x32xf32>, vector<32x128xf32>, vector<16x128xf32> -> vector<16x128xf32>
    %117 = vector.broadcast %3 : vector<1x128xf32> to vector<16x128xf32>
    %118 = arith.addf %116, %117 : vector<16x128xf32>
    %cst_27 = arith.constant 5.000000e-01 : f32
    %119 = vector.broadcast %cst_27 : f32 to vector<16x128xf32>
    %120 = arith.mulf %119, %118 : vector<16x128xf32>
    %cst_28 = arith.constant 0.707106769 : f32
    %121 = vector.broadcast %cst_28 : f32 to vector<16x128xf32>
    %122 = arith.mulf %118, %121 : vector<16x128xf32>
    %123 = math.absf %122 : vector<16x128xf32>
    %cst_29 = arith.constant 0.327591091 : f32
    %124 = vector.broadcast %cst_29 : f32 to vector<16x128xf32>
    %125 = arith.mulf %124, %123 : vector<16x128xf32>
    %cst_30 = arith.constant 1.000000e+00 : f32
    %126 = vector.broadcast %cst_30 : f32 to vector<16x128xf32>
    %127 = arith.addf %126, %125 : vector<16x128xf32>
    %cst_31 = arith.constant 1.000000e+00 : f32
    %128 = vector.broadcast %cst_31 : f32 to vector<16x128xf32>
    %129 = arith.divf %128, %127 : vector<16x128xf32>
    %cst_32 = arith.constant 1.06140542 : f32
    %130 = vector.broadcast %cst_32 : f32 to vector<16x128xf32>
    %131 = arith.mulf %130, %129 : vector<16x128xf32>
    %cst_33 = arith.constant -1.45315206 : f32
    %132 = vector.broadcast %cst_33 : f32 to vector<16x128xf32>
    %133 = arith.addf %131, %132 : vector<16x128xf32>
    %134 = arith.mulf %133, %129 : vector<16x128xf32>
    %cst_34 = arith.constant 1.42141378 : f32
    %135 = vector.broadcast %cst_34 : f32 to vector<16x128xf32>
    %136 = arith.addf %134, %135 : vector<16x128xf32>
    %137 = arith.mulf %136, %129 : vector<16x128xf32>
    %cst_35 = arith.constant -0.284496725 : f32
    %138 = vector.broadcast %cst_35 : f32 to vector<16x128xf32>
    %139 = arith.addf %137, %138 : vector<16x128xf32>
    %140 = arith.mulf %139, %129 : vector<16x128xf32>
    %cst_36 = arith.constant 0.254829586 : f32
    %141 = vector.broadcast %cst_36 : f32 to vector<16x128xf32>
    %142 = arith.addf %140, %141 : vector<16x128xf32>
    %143 = arith.mulf %142, %129 : vector<16x128xf32>
    %cst_37 = arith.constant 0.000000e+00 : f32
    %144 = vector.broadcast %cst_37 : f32 to vector<16x128xf32>
    %145 = arith.subf %144, %123 : vector<16x128xf32>
    %146 = arith.mulf %145, %123 : vector<16x128xf32>
    %147 = math.exp %146 : vector<16x128xf32>
    %148 = arith.mulf %143, %147 : vector<16x128xf32>
    %cst_38 = arith.constant 1.000000e+00 : f32
    %149 = vector.broadcast %cst_38 : f32 to vector<16x128xf32>
    %150 = arith.subf %149, %148 : vector<16x128xf32>
    %cst_39 = arith.constant 0.000000e+00 : f32
    %151 = vector.broadcast %cst_39 : f32 to vector<16x128xf32>
    %152 = arith.cmpf oge, %122, %151 : vector<16x128xf32>
    %cst_40 = arith.constant 0.000000e+00 : f32
    %153 = vector.broadcast %cst_40 : f32 to vector<16x128xf32>
    %154 = arith.subf %153, %150 : vector<16x128xf32>
    %155 = arith.select %152, %150, %154 : vector<16x128xi1>, vector<16x128xf32>
    %cst_41 = arith.constant 1.000000e+00 : f32
    %156 = vector.broadcast %cst_41 : f32 to vector<16x128xf32>
    %157 = arith.addf %156, %155 : vector<16x128xf32>
    %158 = arith.mulf %120, %157 : vector<16x128xf32>
    %c0_42 = arith.constant 0 : index
    %c0_43 = arith.constant 0 : index
    %159 = vector.load %arg4[%c0_42, %c0_43] : memref<128x32xf32, #tpu.memory_space<vmem>>, vector<128x32xf32>
    %cst_44 = arith.constant dense<0.000000e+00> : vector<16x32xf32>
    %160 = tpu.matmul %158, %159, %cst_44 {dimension_numbers = #tpu.dot_dimension_numbers<[1], [0], [0], [1], [0, 0, 1, 1], [], []>} : vector<16x128xf32>, vector<128x32xf32>, vector<16x32xf32> -> vector<16x32xf32>
    %161 = vector.broadcast %9 : vector<1x32xf32> to vector<16x32xf32>
    %162 = arith.addf %160, %161 : vector<16x32xf32>
    %163 = arith.addf %92, %162 : vector<16x32xf32>
    %c0_45 = arith.constant 0 : index
    %c0_46 = arith.constant 0 : index
    %164 = vector.load %arg7[%c0_45, %c0_46] : memref<16x32xf32, #tpu.memory_space<vmem>>, vector<16x32xf32>
    tpu.vector_store %arg7[%c0_45, %c0_46], %163 {strides = array<i32>} : memref<16x32xf32, #tpu.memory_space<vmem>>, vector<16x32xf32>,
    return
  }
}

</mosaic_0001>

<llo_original>
// kernel: vit_block.1
$region0: #{vit_block.1}
  #allocation0 [shape = 'u32[]', space=smem, size = 0x4, offset = 0x4, fixed_abs, tag = 'smem constant byte address 0x4 - core index']
  #allocation1 [shape = 'u32[144,128]{1,0:T(1,128)}', space=vmem, size = 0x12000, scoped, tag = 'internal scratch']
  %s0 = inlined_call_operand.vmem [shape: f32[16,32], index: 0, kind: input, shape index: {}]
  %s1 = inlined_call_operand.vmem [shape: f32[32,128], index: 1, kind: input, shape index: {}]
  %s2 = inlined_call_operand.vmem [shape: f32[32,32], index: 2, kind: input, shape index: {}]
  %s3 = inlined_call_operand.vmem [shape: f32[32,128], index: 3, kind: input, shape index: {}]
  %s4 = inlined_call_operand.vmem [shape: f32[128,32], index: 4, kind: input, shape index: {}]
  %s5 = inlined_call_operand.vmem [shape: f32[8,128], index: 5, kind: input, shape index: {}]
  %s6 = inlined_call_operand.vmem [shape: f32[16,16], index: 6, kind: input, shape index: {}]
  %s7 = inlined_call_operand.hbm [shape: f32[16,32], index: 7, kind: output, shape index: {}]
  %s8 = sld [smem:[#allocation0]]
  $region38: #{vit_block.1} parent=0
    _
  %s10 = ssub.s32 1, %s8
  %s11 = scalar_select 0, %s10, %s8
  $region1: #{vit_block.1} parent=0
    #allocation2 [shape = 'u8[8192]{0}', space=vmem, size = 0x2000, scoped, tag = 'output window, operand 0, single buffered']
    #allocation3 [shape = 's32[1]{0}', space=sflag, size = 0x4, scoped, tag = 'scoped memory for vit_block.1']
    %12 = vsyncpa [#allocation3], 0
    // Predicated region
    $region2: #{vit_block.1} parent=1 // pred_check
      _
    $region3: #{vit_block.1} parent=1 // pred_check_branch
      %14 = sbr.rel (0) target = $region5
    $region4: #{vit_block.1} parent=1 // pred_region
      _
    $region5: #{vit_block.1} parent=1 // pred_fallthru
      _
    // Predicated region
    $region6: #{vit_block.1} parent=1 // pred_check
      _
    $region7: #{vit_block.1} parent=1 // pred_check_branch
      %16 = sbr.rel (0) target = $region9
    $region8: #{vit_block.1} parent=1 // pred_region
      _
    $region9: #{vit_block.1} parent=1 // pred_fallthru
      _
    // Predicated region
    $region10: #{vit_block.1} parent=1 // pred_check
      _
    $region11: #{vit_block.1} parent=1 // pred_check_branch
      %18 = sbr.rel (0) target = $region13
    $region12: #{vit_block.1} parent=1 // pred_region
      _
    $region13: #{vit_block.1} parent=1 // pred_fallthru
      _
    // Predicated region
    $region14: #{vit_block.1} parent=1 // pred_check
      _
    $region15: #{vit_block.1} parent=1 // pred_check_branch
      %20 = sbr.rel (0) target = $region17
    $region16: #{vit_block.1} parent=1 // pred_region
      _
    $region17: #{vit_block.1} parent=1 // pred_fallthru
      _
    // Predicated region
    $region18: #{vit_block.1} parent=1 // pred_check
      _
    $region19: #{vit_block.1} parent=1 // pred_check_branch
      %22 = sbr.rel (0) target = $region21
    $region20: #{vit_block.1} parent=1 // pred_region
      _
    $region21: #{vit_block.1} parent=1 // pred_fallthru
      _
    // Predicated region
    $region22: #{vit_block.1} parent=1 // pred_check
      _
    $region23: #{vit_block.1} parent=1 // pred_check_branch
      %24 = sbr.rel (0) target = $region25
    $region24: #{vit_block.1} parent=1 // pred_region
      _
    $region25: #{vit_block.1} parent=1 // pred_fallthru
      _
    // Predicated region
    $region26: #{vit_block.1} parent=1 // pred_check
      _
    $region27: #{vit_block.1} parent=1 // pred_check_branch
      %26 = sbr.rel (0) target = $region29
    $region28: #{vit_block.1} parent=1 // pred_region
      _
    $region29: #{vit_block.1} parent=1 // pred_fallthru
      _
    %v27 = vld [vmem:[%s0] sm:$0xff]
    %v28 = vld [vmem:[%s0 + $0x8] sm:$0xff]
    %v29 = vld [vmem:[%s5] sm:$0xff]
    %vm30 = vcmask 261120
    %v31 = vsel %vm30, %v27, 0.0
    %32 = vadd.xlane.f32.xlu0 %v31
    %v33 = vpop.xlane.xlu0 %32
    %v34 = vsel %vm30, %v28, 0.0
    %35 = vadd.xlane.f32.xlu0 %v34
    %v36 = vpop.xlane.xlu0 %35
    %v37 = vrcp.pop 32.0
    %v38 = vmul.f32 %v33, %v37
    %v39 = vmul.f32 %v36, %v37
    %v40 = vsub.f32 %v27, %v38
    %v41 = vsub.f32 %v28, %v39
    %v42 = vmul.f32 %v40, %v40
    %v43 = vmul.f32 %v41, %v41
    %v44 = vsel %vm30, %v42, 0.0
    %45 = vadd.xlane.f32.xlu0 %v44
    %v46 = vpop.xlane.xlu0 %45
    %v47 = vsel %vm30, %v43, 0.0
    %48 = vadd.xlane.f32.xlu0 %v47
    %v49 = vpop.xlane.xlu0 %48
    %v50 = vmul.f32 %v46, %v37
    %v51 = vmul.f32 %v49, %v37
    %v52 = vadd.f32 %v50, 1e-06
    %v53 = vadd.f32 %v51, 1e-06
    %v54 = vrsqrt.pop %v52
    %v55 = vrsqrt.pop %v53
    %v56 = vmul.f32 %v40, %v54
    %v57 = vmul.f32 %v41, %v55
    %v58 = vlaneseq
    %v59 = vshrl.u32 %v58, 7
    %v60 = vsub.s32 2, %v59
    %v61 = vrot.slane %v29, %v60
    %v62 = vmul.f32 %v56, %v61
    %v63 = vmul.f32 %v57, %v61
    %v64 = vlaneseq
    %v65 = vshrl.u32 %v64, 7
    %v66 = vsub.s32 3, %v65
    %v67 = vrot.slane %v29, %v66
    %v68 = vadd.f32 %v62, %v67
    %v69 = vadd.f32 %v63, %v67
    %v70 = vld [vmem:[%s1] sm:$0xff]
    %v71 = vld [vmem:[%s1 + $0x8] sm:$0xff]
    %v72 = vld [vmem:[%s1 + $0x10] sm:$0xff]
    %v73 = vld [vmem:[%s1 + $0x18] sm:$0xff]
    %v74 = vlaneseq
    %v75 = vshrl.u32 %v74, 7
    %v76 = vsub.s32 0, %v75
    %v77 = vrot.slane %v29, %v76
    %v79 = vsel %vm30, %v68, 0
    %v82 = vsel %vm30, %v69, 0
    %84 = vmatprep.subr.mxu0 0.0
    %85 = vmatpush1.msra.mxu0 %v70
    %86 = vmatprep.subr.mxu0 0.0
    %87 = vmatpush1.msra.mxu0 %v71
    %88 = vmatprep.subr.mxu0 0.0
    %89 = vmatpush1.msra.mxu0 %v72
    %90 = vmatprep.subr.mxu0 0.0
    %91 = vmatpush1.msra.mxu0 %v73
    %92 = vmatprep.subr.mxu0 0.0
    %93 = vmatpush1.msra.mxu0 0.0
    %94 = vmatprep.subr.mxu0 0.0
    %95 = vmatpush1.msra.mxu0 0.0
    %96 = vmatprep.subr.mxu0 0.0
    %97 = vmatpush1.msra.mxu0 0.0
    %98 = vmatprep.subr.mxu0 0.0
    %99 = vmatpush1.msra.mxu0 0.0
    %100 = vmatprep.subr.mxu0 0.0
    %101 = vmatpush1.msra.mxu0 0.0
    %102 = vmatprep.subr.mxu0 0.0
    %103 = vmatpush1.msra.mxu0 0.0
    %104 = vmatprep.subr.mxu0 0.0
    %105 = vmatpush1.msra.mxu0 0.0
    %106 = vmatprep.subr.mxu0 0.0
    %107 = vmatpush1.msra.mxu0 0.0
    %108 = vmatprep.subr.mxu0 0.0
    %109 = vmatpush1.msra.mxu0 0.0
    %110 = vmatprep.subr.mxu0 0.0
    %111 = vmatpush1.msra.mxu0 0.0
    %112 = vmatprep.subr.mxu0 0.0
    %113 = vmatpush1.msra.mxu0 0.0
    %114 = vmatprep.subr.mxu0 0.0
    %115 = vmatpush1.msra.mxu0 0.0
    %116 = vmatprep.subr.mxu0 0.0
    %117 = vmatpush1.msra.mxu0 0.0
    %118 = vmatprep.subr.mxu0 0.0
    %119 = vmatpush1.msra.mxu0 0.0
    %120 = vmatprep.subr.mxu0 0.0
    %121 = vmatpush1.msra.mxu0 0.0
    %122 = vmatprep.subr.mxu0 0.0
    %123 = vmatpush1.msra.mxu0 0.0
    %124 = vmatprep.subr.mxu0 0.0
    %125 = vmatpush1.msra.mxu0 0.0
    %126 = vmatprep.subr.mxu0 0.0
    %127 = vmatpush1.msra.mxu0 0.0
    %128 = vmatprep.subr.mxu0 0.0
    %129 = vmatpush1.msra.mxu0 0.0
    %130 = vmatprep.subr.mxu0 0.0
    %131 = vmatpush1.msra.mxu0 0.0
    %132 = vmatprep.subr.mxu0 0.0
    %133 = vmatpush1.msra.mxu0 0.0
    %134 = vmatprep.subr.mxu0 0.0
    %135 = vmatpush1.msra.mxu0 0.0
    %136 = vmatprep.subr.mxu0 0.0
    %137 = vmatpush1.msra.mxu0 0.0
    %138 = vmatprep.subr.mxu0 0.0
    %139 = vmatpush1.msra.mxu0 0.0
    %140 = vmatprep.subr.mxu0 0.0
    %141 = vmatpush1.msra.mxu0 0.0
    %142 = vmatprep.subr.mxu0 0.0
    %143 = vmatpush1.msra.mxu0 0.0
    %144 = vmatprep.subr.mxu0 0.0
    %145 = vmatpush1.msra.mxu0 0.0
    %146 = vmatprep.subr.mxu0 0.0
    %147 = vmatpush1.msra.mxu0 0.0
    %148 = vmatprep.mubr.f32.mxu0 0.0
    %149 = vmatmul.mubr.f32.gmra.mrb[0].mxu0 %v79
    %v150 = vpop.f32.mrb[0].mxu0
    %v151 = vadd.f32 %v77, %v150
    %v152 = vpop.f32.mrb[0].mxu0
    %153 = vmatprep.mubr.f32.mxu0 0.0
    %154 = vmatmul.mubr.f32.gmra.mrb[0].mxu0 %v82
    %v155 = vpop.f32.mrb[0].mxu0
    %v156 = vadd.f32 %v77, %v155
    %v157 = vpop.f32.mrb[0].mxu0
    %158 = vdwg.mxu0
    %161 = vrot.lane.b32.xlu0 %v151, 120
    %v162 = vpop.permute.xlu0 %161
    %163 = vrot.lane.b32.xlu0 %v156, 120
    %v164 = vpop.permute.xlu0 %163
    %165 = vrot.lane.b32.xlu0 %v151, 112
    %v166 = vpop.permute.xlu0 %165
    %167 = vrot.lane.b32.xlu0 %v156, 112
    %v168 = vpop.permute.xlu0 %167
    %169 = vrot.lane.b32.xlu0 %v151, 104
    %v170 = vpop.permute.xlu0 %169
    %171 = vrot.lane.b32.xlu0 %v156, 104
    %v172 = vpop.permute.xlu0 %171
    %v173 = vld [vmem:[%s6] sm:$0xff]
    %v174 = vld [vmem:[%s6 + $0x8] sm:$0xff]
    %175 = vrot.lane.b32.xlu0 %v151, 96
    %v176 = vpop.permute.xlu0 %175
    %177 = vrot.lane.b32.xlu0 %v156, 96
    %v178 = vpop.permute.xlu0 %177
    %vm179 = vcmask 64512
    %v180 = vsel %vm179, %v151, 0
    %v182 = vsel %vm179, %v156, 0
    %v184 = vsel %vm179, %v176, 0
    %v186 = vsel %vm179, %v178, 0
    %188 = vmatprep.subr.mxu0 0.0
    %189 = vmatpush1.xpose.msra.mxu0 %v184
    %190 = vmatprep.subr.mxu0 0.0
    %191 = vmatpush1.xpose.msra.mxu0 %v186
    %192 = vmatprep.subr.mxu0 0.0
    %193 = vmatpush1.xpose.msra.mxu0 0.0
    %194 = vmatprep.subr.mxu0 0.0
    %195 = vmatpush1.xpose.msra.mxu0 0.0
    %196 = vmatprep.subr.mxu0 0.0
    %197 = vmatpush1.xpose.msra.mxu0 0.0
    %198 = vmatprep.subr.mxu0 0.0
    %199 = vmatpush1.xpose.msra.mxu0 0.0
    %200 = vmatprep.subr.mxu0 0.0
    %201 = vmatpush1.xpose.msra.mxu0 0.0
    %202 = vmatprep.subr.mxu0 0.0
    %203 = vmatpush1.xpose.msra.mxu0 0.0
    %204 = vmatprep.subr.mxu0 0.0
    %205 = vmatpush1.xpose.msra.mxu0 0.0
    %206 = vmatprep.subr.mxu0 0.0
    %207 = vmatpush1.xpose.msra.mxu0 0.0
    %208 = vmatprep.subr.mxu0 0.0
    %209 = vmatpush1.xpose.msra.mxu0 0.0
    %210 = vmatprep.subr.mxu0 0.0
    %211 = vmatpush1.xpose.msra.mxu0 0.0
    %212 = vmatprep.subr.mxu0 0.0
    %213 = vmatpush1.xpose.msra.mxu0 0.0
    %214 = vmatprep.subr.mxu0 0.0
    %215 = vmatpush1.xpose.msra.mxu0 0.0
    %216 = vmatprep.subr.mxu0 0.0
    %217 = vmatpush1.xpose.msra.mxu0 0.0
    %218 = vmatprep.subr.mxu0 0.0
    %219 = vmatpush1.xpose.msra.mxu0 0.0
    %220 = vmatprep.subr.mxu0 0.0
    %221 = vmatpush1.xpose.msra.mxu0 0.0
    %222 = vmatprep.subr.mxu0 0.0
    %223 = vmatpush1.xpose.msra.mxu0 0.0
    %224 = vmatprep.subr.mxu0 0.0
    %225 = vmatpush1.xpose.msra.mxu0 0.0
    %226 = vmatprep.subr.mxu0 0.0
    %227 = vmatpush1.xpose.msra.mxu0 0.0
    %228 = vmatprep.subr.mxu0 0.0
    %229 = vmatpush1.xpose.msra.mxu0 0.0
    %230 = vmatprep.subr.mxu0 0.0
    %231 = vmatpush1.xpose.msra.mxu0 0.0
    %232 = vmatprep.subr.mxu0 0.0
    %233 = vmatpush1.xpose.msra.mxu0 0.0
    %234 = vmatprep.subr.mxu0 0.0
    %235 = vmatpush1.xpose.msra.mxu0 0.0
    %236 = vmatprep.subr.mxu0 0.0
    %237 = vmatpush1.xpose.msra.mxu0 0.0
    %238 = vmatprep.subr.mxu0 0.0
    %239 = vmatpush1.xpose.msra.mxu0 0.0
    %240 = vmatprep.subr.mxu0 0.0
    %241 = vmatpush1.xpose.msra.mxu0 0.0
    %242 = vmatprep.subr.mxu0 0.0
    %243 = vmatpush1.xpose.msra.mxu0 0.0
    %244 = vmatprep.subr.mxu0 0.0
    %245 = vmatpush1.xpose.msra.mxu0 0.0
    %246 = vmatprep.subr.mxu0 0.0
    %247 = vmatpush1.xpose.msra.mxu0 0.0
    %248 = vmatprep.subr.mxu0 0.0
    %249 = vmatpush1.xpose.msra.mxu0 0.0
    %250 = vmatprep.subr.mxu0 0.0
    %251 = vmatpush1.xpose.msra.mxu0 0.0
    %252 = vmatprep.mubr.f32.mxu0 0.0
    %253 = vmatmul.mubr.f32.gmra.mrb[0].mxu0 %v180
    %v254 = vpop.f32.mrb[0].mxu0
    %v255 = vadd.f32 %v173, %v254
    %v256 = vpop.f32.mrb[0].mxu0
    %257 = vmatprep.mubr.f32.mxu0 0.0
    %258 = vmatmul.mubr.f32.gmra.mrb[0].mxu0 %v182
    %v259 = vpop.f32.mrb[0].mxu0
    %v260 = vadd.f32 %v174, %v259
    %v261 = vpop.f32.mrb[0].mxu0
    %262 = vdwg.mxu0
    %263 = vrot.lane.b32.xlu0 %v162, 96
    %v264 = vpop.permute.xlu0 %263
    %265 = vrot.lane.b32.xlu0 %v164, 96
    %v266 = vpop.permute.xlu0 %265
    %v267 = vsel %vm179, %v162, 0
    %v269 = vsel %vm179, %v164, 0
    %v271 = vsel %vm179, %v264, 0
    %v273 = vsel %vm179, %v266, 0
    %275 = vmatprep.subr.mxu0 0.0
    %276 = vmatpush1.xpose.msra.mxu0 %v271
    %277 = vmatprep.subr.mxu0 0.0
    %278 = vmatpush1.xpose.msra.mxu0 %v273
    %279 = vmatprep.subr.mxu0 0.0
    %280 = vmatpush1.xpose.msra.mxu0 0.0
    %281 = vmatprep.subr.mxu0 0.0
    %282 = vmatpush1.xpose.msra.mxu0 0.0
    %283 = vmatprep.subr.mxu0 0.0
    %284 = vmatpush1.xpose.msra.mxu0 0.0
    %285 = vmatprep.subr.mxu0 0.0
    %286 = vmatpush1.xpose.msra.mxu0 0.0
    %287 = vmatprep.subr.mxu0 0.0
    %288 = vmatpush1.xpose.msra.mxu0 0.0
    %289 = vmatprep.subr.mxu0 0.0
    %290 = vmatpush1.xpose.msra.mxu0 0.0
    %291 = vmatprep.subr.mxu0 0.0
    %292 = vmatpush1.xpose.msra.mxu0 0.0
    %293 = vmatprep.subr.mxu0 0.0
    %294 = vmatpush1.xpose.msra.mxu0 0.0
    %295 = vmatprep.subr.mxu0 0.0
    %296 = vmatpush1.xpose.msra.mxu0 0.0
    %297 = vmatprep.subr.mxu0 0.0
    %298 = vmatpush1.xpose.msra.mxu0 0.0
    %299 = vmatprep.subr.mxu0 0.0
    %300 = vmatpush1.xpose.msra.mxu0 0.0
    %301 = vmatprep.subr.mxu0 0.0
    %302 = vmatpush1.xpose.msra.mxu0 0.0
    %303 = vmatprep.subr.mxu0 0.0
    %304 = vmatpush1.xpose.msra.mxu0 0.0
    %305 = vmatprep.subr.mxu0 0.0
    %306 = vmatpush1.xpose.msra.mxu0 0.0
    %307 = vmatprep.subr.mxu0 0.0
    %308 = vmatpush1.xpose.msra.mxu0 0.0
    %309 = vmatprep.subr.mxu0 0.0
    %310 = vmatpush1.xpose.msra.mxu0 0.0
    %311 = vmatprep.subr.mxu0 0.0
    %312 = vmatpush1.xpose.msra.mxu0 0.0
    %313 = vmatprep.subr.mxu0 0.0
    %314 = vmatpush1.xpose.msra.mxu0 0.0
    %315 = vmatprep.subr.mxu0 0.0
    %316 = vmatpush1.xpose.msra.mxu0 0.0
    %317 = vmatprep.subr.mxu0 0.0
    %318 = vmatpush1.xpose.msra.mxu0 0.0
    %319 = vmatprep.subr.mxu0 0.0
    %320 = vmatpush1.xpose.msra.mxu0 0.0
    %321 = vmatprep.subr.mxu0 0.0
    %322 = vmatpush1.xpose.msra.mxu0 0.0
    %323 = vmatprep.subr.mxu0 0.0
    %324 = vmatpush1.xpose.msra.mxu0 0.0
    %325 = vmatprep.subr.mxu0 0.0
    %326 = vmatpush1.xpose.msra.mxu0 0.0
    %327 = vmatprep.subr.mxu0 0.0
    %328 = vmatpush1.xpose.msra.mxu0 0.0
    %329 = vmatprep.subr.mxu0 0.0
    %330 = vmatpush1.xpose.msra.mxu0 0.0
    %331 = vmatprep.subr.mxu0 0.0
    %332 = vmatpush1.xpose.msra.mxu0 0.0
    %333 = vmatprep.subr.mxu0 0.0
    %334 = vmatpush1.xpose.msra.mxu0 0.0
    %335 = vmatprep.subr.mxu0 0.0
    %336 = vmatpush1.xpose.msra.mxu0 0.0
    %337 = vmatprep.subr.mxu0 0.0
    %338 = vmatpush1.xpose.msra.mxu0 0.0
    %339 = vmatprep.mubr.f32.mxu0 0.0
    %340 = vmatmul.mubr.f32.gmra.mrb[0].mxu0 %v267
    %v341 = vpop.f32.mrb[0].mxu0
    %v342 = vadd.f32 %v173, %v341
    %v343 = vpop.f32.mrb[0].mxu0
    %344 = vmatprep.mubr.f32.mxu0 0.0
    %345 = vmatmul.mubr.f32.gmra.mrb[0].mxu0 %v269
    %v346 = vpop.f32.mrb[0].mxu0
    %v347 = vadd.f32 %v174, %v346
    %v348 = vpop.f32.mrb[0].mxu0
    %349 = vdwg.mxu0
    %350 = vrot.lane.b32.xlu0 %v166, 96
    %v351 = vpop.permute.xlu0 %350
    %352 = vrot.lane.b32.xlu0 %v168, 96
    %v353 = vpop.permute.xlu0 %352
    %v354 = vsel %vm179, %v166, 0
    %v356 = vsel %vm179, %v168, 0
    %v358 = vsel %vm179, %v351, 0
    %v360 = vsel %vm179, %v353, 0
    %362 = vmatprep.subr.mxu0 0.0
    %363 = vmatpush1.xpose.msra.mxu0 %v358
    %364 = vmatprep.subr.mxu0 0.0
    %365 = vmatpush1.xpose.msra.mxu0 %v360
    %366 = vmatprep.subr.mxu0 0.0
    %367 = vmatpush1.xpose.msra.mxu0 0.0
    %368 = vmatprep.subr.mxu0 0.0
    %369 = vmatpush1.xpose.msra.mxu0 0.0
    %370 = vmatprep.subr.mxu0 0.0
    %371 = vmatpush1.xpose.msra.mxu0 0.0
    %372 = vmatprep.subr.mxu0 0.0
    %373 = vmatpush1.xpose.msra.mxu0 0.0
    %374 = vmatprep.subr.mxu0 0.0
    %375 = vmatpush1.xpose.msra.mxu0 0.0
    %376 = vmatprep.subr.mxu0 0.0
    %377 = vmatpush1.xpose.msra.mxu0 0.0
    %378 = vmatprep.subr.mxu0 0.0
    %379 = vmatpush1.xpose.msra.mxu0 0.0
    %380 = vmatprep.subr.mxu0 0.0
    %381 = vmatpush1.xpose.msra.mxu0 0.0
    %382 = vmatprep.subr.mxu0 0.0
    %383 = vmatpush1.xpose.msra.mxu0 0.0
    %384 = vmatprep.subr.mxu0 0.0
    %385 = vmatpush1.xpose.msra.mxu0 0.0
    %386 = vmatprep.subr.mxu0 0.0
    %387 = vmatpush1.xpose.msra.mxu0 0.0
    %388 = vmatprep.subr.mxu0 0.0
    %389 = vmatpush1.xpose.msra.mxu0 0.0
    %390 = vmatprep.subr.mxu0 0.0
    %391 = vmatpush1.xpose.msra.mxu0 0.0
    %392 = vmatprep.subr.mxu0 0.0
    %393 = vmatpush1.xpose.msra.mxu0 0.0
    %394 = vmatprep.subr.mxu0 0.0
    %395 = vmatpush1.xpose.msra.mxu0 0.0
    %396 = vmatprep.subr.mxu0 0.0
    %397 = vmatpush1.xpose.msra.mxu0 0.0
    %398 = vmatprep.subr.mxu0 0.0
    %399 = vmatpush1.xpose.msra.mxu0 0.0
    %400 = vmatprep.subr.mxu0 0.0
    %401 = vmatpush1.xpose.msra.mxu0 0.0
    %402 = vmatprep.subr.mxu0 0.0
    %403 = vmatpush1.xpose.msra.mxu0 0.0
    %404 = vmatprep.subr.mxu0 0.0
    %405 = vmatpush1.xpose.msra.mxu0 0.0
    %406 = vmatprep.subr.mxu0 0.0
    %407 = vmatpush1.xpose.msra.mxu0 0.0
    %408 = vmatprep.subr.mxu0 0.0
    %409 = vmatpush1.xpose.msra.mxu0 0.0
    %410 = vmatprep.subr.mxu0 0.0
    %411 = vmatpush1.xpose.msra.mxu0 0.0
    %412 = vmatprep.subr.mxu0 0.0
    %413 = vmatpush1.xpose.msra.mxu0 0.0
    %414 = vmatprep.subr.mxu0 0.0
    %415 = vmatpush1.xpose.msra.mxu0 0.0
    %416 = vmatprep.subr.mxu0 0.0
    %417 = vmatpush1.xpose.msra.mxu0 0.0
    %418 = vmatprep.subr.mxu0 0.0
    %419 = vmatpush1.xpose.msra.mxu0 0.0
    %420 = vmatprep.subr.mxu0 0.0
    %421 = vmatpush1.xpose.msra.mxu0 0.0
    %422 = vmatprep.subr.mxu0 0.0
    %423 = vmatpush1.xpose.msra.mxu0 0.0
    %424 = vmatprep.subr.mxu0 0.0
    %425 = vmatpush1.xpose.msra.mxu0 0.0
    %426 = vmatprep.mubr.f32.mxu0 0.0
    %427 = vmatmul.mubr.f32.gmra.mrb[0].mxu0 %v354
    %v428 = vpop.f32.mrb[0].mxu0
    %v429 = vadd.f32 %v173, %v428
    %v430 = vpop.f32.mrb[0].mxu0
    %431 = vmatprep.mubr.f32.mxu0 0.0
    %432 = vmatmul.mubr.f32.gmra.mrb[0].mxu0 %v356
    %v433 = vpop.f32.mrb[0].mxu0
    %v434 = vadd.f32 %v174, %v433
    %v435 = vpop.f32.mrb[0].mxu0
    %436 = vdwg.mxu0
    %437 = vrot.lane.b32.xlu0 %v170, 96
    %v438 = vpop.permute.xlu0 %437
    %439 = vrot.lane.b32.xlu0 %v172, 96
    %v440 = vpop.permute.xlu0 %439
    %v441 = vsel %vm179, %v170, 0
    %v443 = vsel %vm179, %v172, 0
    %v445 = vsel %vm179, %v438, 0
    %v447 = vsel %vm179, %v440, 0
    %449 = vmatprep.subr.mxu0 0.0
    %450 = vmatpush1.xpose.msra.mxu0 %v445
    %451 = vmatprep.subr.mxu0 0.0
    %452 = vmatpush1.xpose.msra.mxu0 %v447
    %453 = vmatprep.subr.mxu0 0.0
    %454 = vmatpush1.xpose.msra.mxu0 0.0
    %455 = vmatprep.subr.mxu0 0.0
    %456 = vmatpush1.xpose.msra.mxu0 0.0
    %457 = vmatprep.subr.mxu0 0.0
    %458 = vmatpush1.xpose.msra.mxu0 0.0
    %459 = vmatprep.subr.mxu0 0.0
    %460 = vmatpush1.xpose.msra.mxu0 0.0
    %461 = vmatprep.subr.mxu0 0.0
    %462 = vmatpush1.xpose.msra.mxu0 0.0
    %463 = vmatprep.subr.mxu0 0.0
    %464 = vmatpush1.xpose.msra.mxu0 0.0
    %465 = vmatprep.subr.mxu0 0.0
    %466 = vmatpush1.xpose.msra.mxu0 0.0
    %467 = vmatprep.subr.mxu0 0.0
    %468 = vmatpush1.xpose.msra.mxu0 0.0
    %469 = vmatprep.subr.mxu0 0.0
    %470 = vmatpush1.xpose.msra.mxu0 0.0
    %471 = vmatprep.subr.mxu0 0.0
    %472 = vmatpush1.xpose.msra.mxu0 0.0
    %473 = vmatprep.subr.mxu0 0.0
    %474 = vmatpush1.xpose.msra.mxu0 0.0
    %475 = vmatprep.subr.mxu0 0.0
    %476 = vmatpush1.xpose.msra.mxu0 0.0
    %477 = vmatprep.subr.mxu0 0.0
    %478 = vmatpush1.xpose.msra.mxu0 0.0
    %479 = vmatprep.subr.mxu0 0.0
    %480 = vmatpush1.xpose.msra.mxu0 0.0
    %481 = vmatprep.subr.mxu0 0.0
    %482 = vmatpush1.xpose.msra.mxu0 0.0
    %483 = vmatprep.subr.mxu0 0.0
    %484 = vmatpush1.xpose.msra.mxu0 0.0
    %485 = vmatprep.subr.mxu0 0.0
    %486 = vmatpush1.xpose.msra.mxu0 0.0
    %487 = vmatprep.subr.mxu0 0.0
    %488 = vmatpush1.xpose.msra.mxu0 0.0
    %489 = vmatprep.subr.mxu0 0.0
    %490 = vmatpush1.xpose.msra.mxu0 0.0
    %491 = vmatprep.subr.mxu0 0.0
    %492 = vmatpush1.xpose.msra.mxu0 0.0
    %493 = vmatprep.subr.mxu0 0.0
    %494 = vmatpush1.xpose.msra.mxu0 0.0
    %495 = vmatprep.subr.mxu0 0.0
    %496 = vmatpush1.xpose.msra.mxu0 0.0
    %497 = vmatprep.subr.mxu0 0.0
    %498 = vmatpush1.xpose.msra.mxu0 0.0
    %499 = vmatprep.subr.mxu0 0.0
    %500 = vmatpush1.xpose.msra.mxu0 0.0
    %501 = vmatprep.subr.mxu0 0.0
    %502 = vmatpush1.xpose.msra.mxu0 0.0
    %503 = vmatprep.subr.mxu0 0.0
    %504 = vmatpush1.xpose.msra.mxu0 0.0
    %505 = vmatprep.subr.mxu0 0.0
    %506 = vmatpush1.xpose.msra.mxu0 0.0
    %507 = vmatprep.subr.mxu0 0.0
    %508 = vmatpush1.xpose.msra.mxu0 0.0
    %509 = vmatprep.subr.mxu0 0.0
    %510 = vmatpush1.xpose.msra.mxu0 0.0
    %511 = vmatprep.subr.mxu0 0.0
    %512 = vmatpush1.xpose.msra.mxu0 0.0
    %513 = vmatprep.mubr.f32.mxu0 0.0
    %514 = vmatmul.mubr.f32.gmra.mrb[0].mxu0 %v441
    %v515 = vpop.f32.mrb[0].mxu0
    %v516 = vadd.f32 %v173, %v515
    %v517 = vpop.f32.mrb[0].mxu0
    %518 = vmatprep.mubr.f32.mxu0 0.0
    %519 = vmatmul.mubr.f32.gmra.mrb[0].mxu0 %v443
    %v520 = vpop.f32.mrb[0].mxu0
    %v521 = vadd.f32 %v174, %v520
    %v522 = vpop.f32.mrb[0].mxu0
    %523 = vdwg.mxu0
    %vm524 = vcmask 130048
    %v525 = vsel %vm524, %v255, -inf
    %526 = vmax.xlane.f32.xlu0 %v525
    %v527 = vpop.xlane.xlu0 %526
    %v528 = vsel %vm524, %v260, -inf
    %529 = vmax.xlane.f32.xlu0 %v528
    %v530 = vpop.xlane.xlu0 %529
    %v531 = vsel %vm524, %v342, -inf
    %532 = vmax.xlane.f32.xlu0 %v531
    %v533 = vpop.xlane.xlu0 %532
    %v534 = vsel %vm524, %v347, -inf
    %535 = vmax.xlane.f32.xlu0 %v534
    %v536 = vpop.xlane.xlu0 %535
    %v537 = vsel %vm524, %v429, -inf
    %538 = vmax.xlane.f32.xlu0 %v537
    %v539 = vpop.xlane.xlu0 %538
    %v540 = vsel %vm524, %v434, -inf
    %541 = vmax.xlane.f32.xlu0 %v540
    %v542 = vpop.xlane.xlu0 %541
    %v543 = vsel %vm524, %v516, -inf
    %544 = vmax.xlane.f32.xlu0 %v543
    %v545 = vpop.xlane.xlu0 %544
    %v546 = vsel %vm524, %v521, -inf
    %547 = vmax.xlane.f32.xlu0 %v546
    %v548 = vpop.xlane.xlu0 %547
    %v549 = vsub.f32 %v255, %v527
    %v550 = vsub.f32 %v260, %v530
    %v551 = vsub.f32 %v342, %v533
    %v552 = vsub.f32 %v347, %v536
    %v553 = vsub.f32 %v429, %v539
    %v554 = vsub.f32 %v434, %v542
    %v555 = vsub.f32 %v516, %v545
    %v556 = vsub.f32 %v521, %v548
    %v557 = vmul.f32 %v549, 1.442695
    %v558 = vpow.pop %v557
    %v559 = vmul.f32 %v550, 1.442695
    %v560 = vpow.pop %v559
    %v561 = vmul.f32 %v551, 1.442695
    %v562 = vpow.pop %v561
    %v563 = vmul.f32 %v552, 1.442695
    %v564 = vpow.pop %v563
    %v565 = vmul.f32 %v553, 1.442695
    %v566 = vpow.pop %v565
    %v567 = vmul.f32 %v554, 1.442695
    %v568 = vpow.pop %v567
    %v569 = vmul.f32 %v555, 1.442695
    %v570 = vpow.pop %v569
    %v571 = vmul.f32 %v556, 1.442695
    %v572 = vpow.pop %v571
    %v573 = vsel %vm524, %v558, 0.0
    %574 = vadd.xlane.f32.xlu0 %v573
    %v575 = vpop.xlane.xlu0 %574
    %v576 = vsel %vm524, %v560, 0.0
    %577 = vadd.xlane.f32.xlu0 %v576
    %v578 = vpop.xlane.xlu0 %577
    %v579 = vsel %vm524, %v562, 0.0
    %580 = vadd.xlane.f32.xlu0 %v579
    %v581 = vpop.xlane.xlu0 %580
    %v582 = vsel %vm524, %v564, 0.0
    %583 = vadd.xlane.f32.xlu0 %v582
    %v584 = vpop.xlane.xlu0 %583
    %v585 = vsel %vm524, %v566, 0.0
    %586 = vadd.xlane.f32.xlu0 %v585
    %v587 = vpop.xlane.xlu0 %586
    %v588 = vsel %vm524, %v568, 0.0
    %589 = vadd.xlane.f32.xlu0 %v588
    %v590 = vpop.xlane.xlu0 %589
    %v591 = vsel %vm524, %v570, 0.0
    %592 = vadd.xlane.f32.xlu0 %v591
    %v593 = vpop.xlane.xlu0 %592
    %v594 = vsel %vm524, %v572, 0.0
    %595 = vadd.xlane.f32.xlu0 %v594
    %v596 = vpop.xlane.xlu0 %595
    %v597 = vrcp.pop %v575
    %v598 = vrcp.pop %v578
    %v599 = vrcp.pop %v581
    %v600 = vrcp.pop %v584
    %v601 = vrcp.pop %v587
    %v602 = vrcp.pop %v590
    %v603 = vrcp.pop %v593
    %v604 = vrcp.pop %v596
    %v605 = vmul.f32 %v558, %v597
    %v606 = vmul.f32 %v560, %v598
    %v607 = vmul.f32 %v562, %v599
    %v608 = vmul.f32 %v564, %v600
    %v609 = vmul.f32 %v566, %v601
    %v610 = vmul.f32 %v568, %v602
    %v611 = vmul.f32 %v570, %v603
    %v612 = vmul.f32 %v572, %v604
    %613 = vrot.lane.b32.xlu0 %v151, 64
    %v614 = vpop.permute.xlu0 %613
    %615 = vrot.lane.b32.xlu0 %v156, 64
    %v616 = vpop.permute.xlu0 %615
    %v620 = vsel %vm524, %v605, 0
    %v623 = vsel %vm524, %v606, 0
    %625 = vmatprep.subr.mxu0 0.0
    %626 = vmatpush1.msra.mxu0 %v614
    %627 = vmatprep.subr.mxu0 0.0
    %628 = vmatpush1.msra.mxu0 %v616
    %629 = vmatprep.subr.mxu0 0.0
    %630 = vmatpush1.msra.mxu0 0.0
    %631 = vmatprep.subr.mxu0 0.0
    %632 = vmatpush1.msra.mxu0 0.0
    %633 = vmatprep.subr.mxu0 0.0
    %634 = vmatpush1.msra.mxu0 0.0
    %635 = vmatprep.subr.mxu0 0.0
    %636 = vmatpush1.msra.mxu0 0.0
    %637 = vmatprep.subr.mxu0 0.0
    %638 = vmatpush1.msra.mxu0 0.0
    %639 = vmatprep.subr.mxu0 0.0
    %640 = vmatpush1.msra.mxu0 0.0
    %641 = vmatprep.subr.mxu0 0.0
    %642 = vmatpush1.msra.mxu0 0.0
    %643 = vmatprep.subr.mxu0 0.0
    %644 = vmatpush1.msra.mxu0 0.0
    %645 = vmatprep.subr.mxu0 0.0
    %646 = vmatpush1.msra.mxu0 0.0
    %647 = vmatprep.subr.mxu0 0.0
    %648 = vmatpush1.msra.mxu0 0.0
    %649 = vmatprep.subr.mxu0 0.0
    %650 = vmatpush1.msra.mxu0 0.0
    %651 = vmatprep.subr.mxu0 0.0
    %652 = vmatpush1.msra.mxu0 0.0
    %653 = vmatprep.subr.mxu0 0.0
    %654 = vmatpush1.msra.mxu0 0.0
    %655 = vmatprep.subr.mxu0 0.0
    %656 = vmatpush1.msra.mxu0 0.0
    %657 = vmatprep.subr.mxu0 0.0
    %658 = vmatpush1.msra.mxu0 0.0
    %659 = vmatprep.subr.mxu0 0.0
    %660 = vmatpush1.msra.mxu0 0.0
    %661 = vmatprep.subr.mxu0 0.0
    %662 = vmatpush1.msra.mxu0 0.0
    %663 = vmatprep.subr.mxu0 0.0
    %664 = vmatpush1.msra.mxu0 0.0
    %665 = vmatprep.subr.mxu0 0.0
    %666 = vmatpush1.msra.mxu0 0.0
    %667 = vmatprep.subr.mxu0 0.0
    %668 = vmatpush1.msra.mxu0 0.0
    %669 = vmatprep.subr.mxu0 0.0
    %670 = vmatpush1.msra.mxu0 0.0
    %671 = vmatprep.subr.mxu0 0.0
    %672 = vmatpush1.msra.mxu0 0.0
    %673 = vmatprep.subr.mxu0 0.0
    %674 = vmatpush1.msra.mxu0 0.0
    %675 = vmatprep.subr.mxu0 0.0
    %676 = vmatpush1.msra.mxu0 0.0
    %677 = vmatprep.subr.mxu0 0.0
    %678 = vmatpush1.msra.mxu0 0.0
    %679 = vmatprep.subr.mxu0 0.0
    %680 = vmatpush1.msra.mxu0 0.0
    %681 = vmatprep.subr.mxu0 0.0
    %682 = vmatpush1.msra.mxu0 0.0
    %683 = vmatprep.subr.mxu0 0.0
    %684 = vmatpush1.msra.mxu0 0.0
    %685 = vmatprep.subr.mxu0 0.0
    %686 = vmatpush1.msra.mxu0 0.0
    %687 = vmatprep.subr.mxu0 0.0
    %688 = vmatpush1.msra.mxu0 0.0
    %689 = vmatprep.mubr.f32.mxu0 0.0
    %690 = vmatmul.mubr.f32.gmra.mrb[0].mxu0 %v620
    %v691 = vpop.f32.mrb[0].mxu0
    %v692 = vadd.f32 0.0, %v691
    %v693 = vpop.f32.mrb[0].mxu0
    %694 = vmatprep.mubr.f32.mxu0 0.0
    %695 = vmatmul.mubr.f32.gmra.mrb[0].mxu0 %v623
    %v696 = vpop.f32.mrb[0].mxu0
    %v697 = vadd.f32 0.0, %v696
    %v698 = vpop.f32.mrb[0].mxu0
    %699 = vdwg.mxu0
    %700 = vrot.lane.b32.xlu0 %v162, 64
    %v701 = vpop.permute.xlu0 %700
    %702 = vrot.lane.b32.xlu0 %v164, 64
    %v703 = vpop.permute.xlu0 %702
    %v707 = vsel %vm524, %v607, 0
    %v710 = vsel %vm524, %v608, 0
    %712 = vmatprep.subr.mxu0 0.0
    %713 = vmatpush1.msra.mxu0 %v701
    %714 = vmatprep.subr.mxu0 0.0
    %715 = vmatpush1.msra.mxu0 %v703
    %716 = vmatprep.subr.mxu0 0.0
    %717 = vmatpush1.msra.mxu0 0.0
    %718 = vmatprep.subr.mxu0 0.0
    %719 = vmatpush1.msra.mxu0 0.0
    %720 = vmatprep.subr.mxu0 0.0
    %721 = vmatpush1.msra.mxu0 0.0
    %722 = vmatprep.subr.mxu0 0.0
    %723 = vmatpush1.msra.mxu0 0.0
    %724 = vmatprep.subr.mxu0 0.0
    %725 = vmatpush1.msra.mxu0 0.0
    %726 = vmatprep.subr.mxu0 0.0
    %727 = vmatpush1.msra.mxu0 0.0
    %728 = vmatprep.subr.mxu0 0.0
    %729 = vmatpush1.msra.mxu0 0.0
    %730 = vmatprep.subr.mxu0 0.0
    %731 = vmatpush1.msra.mxu0 0.0
    %732 = vmatprep.subr.mxu0 0.0
    %733 = vmatpush1.msra.mxu0 0.0
    %734 = vmatprep.subr.mxu0 0.0
    %735 = vmatpush1.msra.mxu0 0.0
    %736 = vmatprep.subr.mxu0 0.0
    %737 = vmatpush1.msra.mxu0 0.0
    %738 = vmatprep.subr.mxu0 0.0
    %739 = vmatpush1.msra.mxu0 0.0
    %740 = vmatprep.subr.mxu0 0.0
    %741 = vmatpush1.msra.mxu0 0.0
    %742 = vmatprep.subr.mxu0 0.0
    %743 = vmatpush1.msra.mxu0 0.0
    %744 = vmatprep.subr.mxu0 0.0
    %745 = vmatpush1.msra.mxu0 0.0
    %746 = vmatprep.subr.mxu0 0.0
    %747 = vmatpush1.msra.mxu0 0.0
    %748 = vmatprep.subr.mxu0 0.0
    %749 = vmatpush1.msra.mxu0 0.0
    %750 = vmatprep.subr.mxu0 0.0
    %751 = vmatpush1.msra.mxu0 0.0
    %752 = vmatprep.subr.mxu0 0.0
    %753 = vmatpush1.msra.mxu0 0.0
    %754 = vmatprep.subr.mxu0 0.0
    %755 = vmatpush1.msra.mxu0 0.0
    %756 = vmatprep.subr.mxu0 0.0
    %757 = vmatpush1.msra.mxu0 0.0
    %758 = vmatprep.subr.mxu0 0.0
    %759 = vmatpush1.msra.mxu0 0.0
    %760 = vmatprep.subr.mxu0 0.0
    %761 = vmatpush1.msra.mxu0 0.0
    %762 = vmatprep.subr.mxu0 0.0
    %763 = vmatpush1.msra.mxu0 0.0
    %764 = vmatprep.subr.mxu0 0.0
    %765 = vmatpush1.msra.mxu0 0.0
    %766 = vmatprep.subr.mxu0 0.0
    %767 = vmatpush1.msra.mxu0 0.0
    %768 = vmatprep.subr.mxu0 0.0
    %769 = vmatpush1.msra.mxu0 0.0
    %770 = vmatprep.subr.mxu0 0.0
    %771 = vmatpush1.msra.mxu0 0.0
    %772 = vmatprep.subr.mxu0 0.0
    %773 = vmatpush1.msra.mxu0 0.0
    %774 = vmatprep.subr.mxu0 0.0
    %775 = vmatpush1.msra.mxu0 0.0
    %776 = vmatprep.mubr.f32.mxu0 0.0
    %777 = vmatmul.mubr.f32.gmra.mrb[0].mxu0 %v707
    %v778 = vpop.f32.mrb[0].mxu0
    %v779 = vadd.f32 0.0, %v778
    %v780 = vpop.f32.mrb[0].mxu0
    %781 = vmatprep.mubr.f32.mxu0 0.0
    %782 = vmatmul.mubr.f32.gmra.mrb[0].mxu0 %v710
    %v783 = vpop.f32.mrb[0].mxu0
    %v784 = vadd.f32 0.0, %v783
    %v785 = vpop.f32.mrb[0].mxu0
    %786 = vdwg.mxu0
    %787 = vrot.lane.b32.xlu0 %v166, 64
    %v788 = vpop.permute.xlu0 %787
    %789 = vrot.lane.b32.xlu0 %v168, 64
    %v790 = vpop.permute.xlu0 %789
    %v794 = vsel %vm524, %v609, 0
    %v797 = vsel %vm524, %v610, 0
    %799 = vmatprep.subr.mxu0 0.0
    %800 = vmatpush1.msra.mxu0 %v788
    %801 = vmatprep.subr.mxu0 0.0
    %802 = vmatpush1.msra.mxu0 %v790
    %803 = vmatprep.subr.mxu0 0.0
    %804 = vmatpush1.msra.mxu0 0.0
    %805 = vmatprep.subr.mxu0 0.0
    %806 = vmatpush1.msra.mxu0 0.0
    %807 = vmatprep.subr.mxu0 0.0
    %808 = vmatpush1.msra.mxu0 0.0
    %809 = vmatprep.subr.mxu0 0.0
    %810 = vmatpush1.msra.mxu0 0.0
    %811 = vmatprep.subr.mxu0 0.0
    %812 = vmatpush1.msra.mxu0 0.0
    %813 = vmatprep.subr.mxu0 0.0
    %814 = vmatpush1.msra.mxu0 0.0
    %815 = vmatprep.subr.mxu0 0.0
    %816 = vmatpush1.msra.mxu0 0.0
    %817 = vmatprep.subr.mxu0 0.0
    %818 = vmatpush1.msra.mxu0 0.0
    %819 = vmatprep.subr.mxu0 0.0
    %820 = vmatpush1.msra.mxu0 0.0
    %821 = vmatprep.subr.mxu0 0.0
    %822 = vmatpush1.msra.mxu0 0.0
    %823 = vmatprep.subr.mxu0 0.0
    %824 = vmatpush1.msra.mxu0 0.0
    %825 = vmatprep.subr.mxu0 0.0
    %826 = vmatpush1.msra.mxu0 0.0
    %827 = vmatprep.subr.mxu0 0.0
    %828 = vmatpush1.msra.mxu0 0.0
    %829 = vmatprep.subr.mxu0 0.0
    %830 = vmatpush1.msra.mxu0 0.0
    %831 = vmatprep.subr.mxu0 0.0
    %832 = vmatpush1.msra.mxu0 0.0
    %833 = vmatprep.subr.mxu0 0.0
    %834 = vmatpush1.msra.mxu0 0.0
    %835 = vmatprep.subr.mxu0 0.0
    %836 = vmatpush1.msra.mxu0 0.0
    %837 = vmatprep.subr.mxu0 0.0
    %838 = vmatpush1.msra.mxu0 0.0
    %839 = vmatprep.subr.mxu0 0.0
    %840 = vmatpush1.msra.mxu0 0.0
    %841 = vmatprep.subr.mxu0 0.0
    %842 = vmatpush1.msra.mxu0 0.0
    %843 = vmatprep.subr.mxu0 0.0
    %844 = vmatpush1.msra.mxu0 0.0
    %845 = vmatprep.subr.mxu0 0.0
    %846 = vmatpush1.msra.mxu0 0.0
    %847 = vmatprep.subr.mxu0 0.0
    %848 = vmatpush1.msra.mxu0 0.0
    %849 = vmatprep.subr.mxu0 0.0
    %850 = vmatpush1.msra.mxu0 0.0
    %851 = vmatprep.subr.mxu0 0.0
    %852 = vmatpush1.msra.mxu0 0.0
    %853 = vmatprep.subr.mxu0 0.0
    %854 = vmatpush1.msra.mxu0 0.0
    %855 = vmatprep.subr.mxu0 0.0
    %856 = vmatpush1.msra.mxu0 0.0
    %857 = vmatprep.subr.mxu0 0.0
    %858 = vmatpush1.msra.mxu0 0.0
    %859 = vmatprep.subr.mxu0 0.0
    %860 = vmatpush1.msra.mxu0 0.0
    %861 = vmatprep.subr.mxu0 0.0
    %862 = vmatpush1.msra.mxu0 0.0
    %863 = vmatprep.mubr.f32.mxu0 0.0
    %864 = vmatmul.mubr.f32.gmra.mrb[0].mxu0 %v794
    %v865 = vpop.f32.mrb[0].mxu0
    %v866 = vadd.f32 0.0, %v865
    %v867 = vpop.f32.mrb[0].mxu0
    %868 = vmatprep.mubr.f32.mxu0 0.0
    %869 = vmatmul.mubr.f32.gmra.mrb[0].mxu0 %v797
    %v870 = vpop.f32.mrb[0].mxu0
    %v871 = vadd.f32 0.0, %v870
    %v872 = vpop.f32.mrb[0].mxu0
    %873 = vdwg.mxu0
    %874 = vrot.lane.b32.xlu0 %v170, 64
    %v875 = vpop.permute.xlu0 %874
    %876 = vrot.lane.b32.xlu0 %v172, 64
    %v877 = vpop.permute.xlu0 %876
    %v881 = vsel %vm524, %v611, 0
    %v884 = vsel %vm524, %v612, 0
    %886 = vmatprep.subr.mxu0 0.0
    %887 = vmatpush1.msra.mxu0 %v875
    %888 = vmatprep.subr.mxu0 0.0
    %889 = vmatpush1.msra.mxu0 %v877
    %890 = vmatprep.subr.mxu0 0.0
    %891 = vmatpush1.msra.mxu0 0.0
    %892 = vmatprep.subr.mxu0 0.0
    %893 = vmatpush1.msra.mxu0 0.0
    %894 = vmatprep.subr.mxu0 0.0
    %895 = vmatpush1.msra.mxu0 0.0
    %896 = vmatprep.subr.mxu0 0.0
    %897 = vmatpush1.msra.mxu0 0.0
    %898 = vmatprep.subr.mxu0 0.0
    %899 = vmatpush1.msra.mxu0 0.0
    %900 = vmatprep.subr.mxu0 0.0
    %901 = vmatpush1.msra.mxu0 0.0
    %902 = vmatprep.subr.mxu0 0.0
    %903 = vmatpush1.msra.mxu0 0.0
    %904 = vmatprep.subr.mxu0 0.0
    %905 = vmatpush1.msra.mxu0 0.0
    %906 = vmatprep.subr.mxu0 0.0
    %907 = vmatpush1.msra.mxu0 0.0
    %908 = vmatprep.subr.mxu0 0.0
    %909 = vmatpush1.msra.mxu0 0.0
    %910 = vmatprep.subr.mxu0 0.0
    %911 = vmatpush1.msra.mxu0 0.0
    %912 = vmatprep.subr.mxu0 0.0
    %913 = vmatpush1.msra.mxu0 0.0
    %914 = vmatprep.subr.mxu0 0.0
    %915 = vmatpush1.msra.mxu0 0.0
    %916 = vmatprep.subr.mxu0 0.0
    %917 = vmatpush1.msra.mxu0 0.0
    %918 = vmatprep.subr.mxu0 0.0
    %919 = vmatpush1.msra.mxu0 0.0
    %920 = vmatprep.subr.mxu0 0.0
    %921 = vmatpush1.msra.mxu0 0.0
    %922 = vmatprep.subr.mxu0 0.0
    %923 = vmatpush1.msra.mxu0 0.0
    %924 = vmatprep.subr.mxu0 0.0
    %925 = vmatpush1.msra.mxu0 0.0
    %926 = vmatprep.subr.mxu0 0.0
    %927 = vmatpush1.msra.mxu0 0.0
    %928 = vmatprep.subr.mxu0 0.0
    %929 = vmatpush1.msra.mxu0 0.0
    %930 = vmatprep.subr.mxu0 0.0
    %931 = vmatpush1.msra.mxu0 0.0
    %932 = vmatprep.subr.mxu0 0.0
    %933 = vmatpush1.msra.mxu0 0.0
    %934 = vmatprep.subr.mxu0 0.0
    %935 = vmatpush1.msra.mxu0 0.0
    %936 = vmatprep.subr.mxu0 0.0
    %937 = vmatpush1.msra.mxu0 0.0
    %938 = vmatprep.subr.mxu0 0.0
    %939 = vmatpush1.msra.mxu0 0.0
    %940 = vmatprep.subr.mxu0 0.0
    %941 = vmatpush1.msra.mxu0 0.0
    %942 = vmatprep.subr.mxu0 0.0
    %943 = vmatpush1.msra.mxu0 0.0
    %944 = vmatprep.subr.mxu0 0.0
    %945 = vmatpush1.msra.mxu0 0.0
    %946 = vmatprep.subr.mxu0 0.0
    %947 = vmatpush1.msra.mxu0 0.0
    %948 = vmatprep.subr.mxu0 0.0
    %949 = vmatpush1.msra.mxu0 0.0
    %950 = vmatprep.mubr.f32.mxu0 0.0
    %951 = vmatmul.mubr.f32.gmra.mrb[0].mxu0 %v881
    %v952 = vpop.f32.mrb[0].mxu0
    %v953 = vadd.f32 0.0, %v952
    %v954 = vpop.f32.mrb[0].mxu0
    %955 = vmatprep.mubr.f32.mxu0 0.0
    %956 = vmatmul.mubr.f32.gmra.mrb[0].mxu0 %v884
    %v957 = vpop.f32.mrb[0].mxu0
    %v958 = vadd.f32 0.0, %v957
    %v959 = vpop.f32.mrb[0].mxu0
    %960 = vdwg.mxu0
    %963 = vrot.lane.b32.xlu0 %v779, 8
    %v964 = vpop.permute.xlu0 %963
    %965 = vrot.lane.b32.xlu0 %v784, 8
    %v966 = vpop.permute.xlu0 %965
    %971 = vrot.lane.b32.xlu0 %v866, 16
    %v972 = vpop.permute.xlu0 %971
    %973 = vrot.lane.b32.xlu0 %v871, 16
    %v974 = vpop.permute.xlu0 %973
    %979 = vrot.lane.b32.xlu0 %v953, 24
    %v980 = vpop.permute.xlu0 %979
    %981 = vrot.lane.b32.xlu0 %v958, 24
    %v982 = vpop.permute.xlu0 %981
    %v985 = vsel %vm179, %v692, %v964
    %v986 = vsel %vm179, %v697, %v966
    %v987 = vsel %vm524, %v985, %v972
    %v988 = vsel %vm524, %v986, %v974
    %vm989 = vcmask 195584
    %v990 = vsel %vm989, %v987, %v980
    %v991 = vsel %vm989, %v988, %v982
    %v992 = vld [vmem:[%s2] sm:$0xff]
    %v993 = vld [vmem:[%s2 + $0x8] sm:$0xff]
    %v994 = vld [vmem:[%s2 + $0x10] sm:$0xff]
    %v995 = vld [vmem:[%s2 + $0x18] sm:$0xff]
    %v997 = vsel %vm30, %v990, 0
    %v1000 = vsel %vm30, %v991, 0
    %1002 = vmatprep.subr.mxu0 0.0
    %1003 = vmatpush1.msra.mxu0 %v992
    %1004 = vmatprep.subr.mxu0 0.0
    %1005 = vmatpush1.msra.mxu0 %v993
    %1006 = vmatprep.subr.mxu0 0.0
    %1007 = vmatpush1.msra.mxu0 %v994
    %1008 = vmatprep.subr.mxu0 0.0
    %1009 = vmatpush1.msra.mxu0 %v995
    %1010 = vmatprep.subr.mxu0 0.0
    %1011 = vmatpush1.msra.mxu0 0.0
    %1012 = vmatprep.subr.mxu0 0.0
    %1013 = vmatpush1.msra.mxu0 0.0
    %1014 = vmatprep.subr.mxu0 0.0
    %1015 = vmatpush1.msra.mxu0 0.0
    %1016 = vmatprep.subr.mxu0 0.0
    %1017 = vmatpush1.msra.mxu0 0.0
    %1018 = vmatprep.subr.mxu0 0.0
    %1019 = vmatpush1.msra.mxu0 0.0
    %1020 = vmatprep.subr.mxu0 0.0
    %1021 = vmatpush1.msra.mxu0 0.0
    %1022 = vmatprep.subr.mxu0 0.0
    %1023 = vmatpush1.msra.mxu0 0.0
    %1024 = vmatprep.subr.mxu0 0.0
    %1025 = vmatpush1.msra.mxu0 0.0
    %1026 = vmatprep.subr.mxu0 0.0
    %1027 = vmatpush1.msra.mxu0 0.0
    %1028 = vmatprep.subr.mxu0 0.0
    %1029 = vmatpush1.msra.mxu0 0.0
    %1030 = vmatprep.subr.mxu0 0.0
    %1031 = vmatpush1.msra.mxu0 0.0
    %1032 = vmatprep.subr.mxu0 0.0
    %1033 = vmatpush1.msra.mxu0 0.0
    %1034 = vmatprep.subr.mxu0 0.0
    %1035 = vmatpush1.msra.mxu0 0.0
    %1036 = vmatprep.subr.mxu0 0.0
    %1037 = vmatpush1.msra.mxu0 0.0
    %1038 = vmatprep.subr.mxu0 0.0
    %1039 = vmatpush1.msra.mxu0 0.0
    %1040 = vmatprep.subr.mxu0 0.0
    %1041 = vmatpush1.msra.mxu0 0.0
    %1042 = vmatprep.subr.mxu0 0.0
    %1043 = vmatpush1.msra.mxu0 0.0
    %1044 = vmatprep.subr.mxu0 0.0
    %1045 = vmatpush1.msra.mxu0 0.0
    %1046 = vmatprep.subr.mxu0 0.0
    %1047 = vmatpush1.msra.mxu0 0.0
    %1048 = vmatprep.subr.mxu0 0.0
    %1049 = vmatpush1.msra.mxu0 0.0
    %1050 = vmatprep.subr.mxu0 0.0
    %1051 = vmatpush1.msra.mxu0 0.0
    %1052 = vmatprep.subr.mxu0 0.0
    %1053 = vmatpush1.msra.mxu0 0.0
    %1054 = vmatprep.subr.mxu0 0.0
    %1055 = vmatpush1.msra.mxu0 0.0
    %1056 = vmatprep.subr.mxu0 0.0
    %1057 = vmatpush1.msra.mxu0 0.0
    %1058 = vmatprep.subr.mxu0 0.0
    %1059 = vmatpush1.msra.mxu0 0.0
    %1060 = vmatprep.subr.mxu0 0.0
    %1061 = vmatpush1.msra.mxu0 0.0
    %1062 = vmatprep.subr.mxu0 0.0
    %1063 = vmatpush1.msra.mxu0 0.0
    %1064 = vmatprep.subr.mxu0 0.0
    %1065 = vmatpush1.msra.mxu0 0.0
    %1066 = vmatprep.mubr.f32.mxu0 0.0
    %1067 = vmatmul.mubr.f32.gmra.mrb[0].mxu0 %v997
    %v1068 = vpop.f32.mrb[0].mxu0
    %v1069 = vadd.f32 0.0, %v1068
    %v1070 = vpop.f32.mrb[0].mxu0
    %1071 = vmatprep.mubr.f32.mxu0 0.0
    %1072 = vmatmul.mubr.f32.gmra.mrb[0].mxu0 %v1000
    %v1073 = vpop.f32.mrb[0].mxu0
    %v1074 = vadd.f32 0.0, %v1073
    %v1075 = vpop.f32.mrb[0].mxu0
    %1076 = vdwg.mxu0
    %v1077 = vadd.f32 %v27, %v1069
    %v1078 = vadd.f32 %v28, %v1074
    %v1079 = vlaneseq
    %v1080 = vshrl.u32 %v1079, 7
    %v1081 = vsub.s32 6, %v1080
    %v1082 = vrot.slane %v29, %v1081
    %v1083 = vadd.f32 %v1077, %v1082
    %v1084 = vadd.f32 %v1078, %v1082
    %v1085 = vsel %vm30, %v1083, 0.0
    %1086 = vadd.xlane.f32.xlu0 %v1085
    %v1087 = vpop.xlane.xlu0 %1086
    %v1088 = vsel %vm30, %v1084, 0.0
    %1089 = vadd.xlane.f32.xlu0 %v1088
    %v1090 = vpop.xlane.xlu0 %1089
    %v1091 = vmul.f32 %v1087, %v37
    %v1092 = vmul.f32 %v1090, %v37
    %v1093 = vsub.f32 %v1083, %v1091
    %v1094 = vsub.f32 %v1084, %v1092
    %v1095 = vmul.f32 %v1093, %v1093
    %v1096 = vmul.f32 %v1094, %v1094
    %v1097 = vsel %vm30, %v1095, 0.0
    %1098 = vadd.xlane.f32.xlu0 %v1097
    %v1099 = vpop.xlane.xlu0 %1098
    %v1100 = vsel %vm30, %v1096, 0.0
    %1101 = vadd.xlane.f32.xlu0 %v1100
    %v1102 = vpop.xlane.xlu0 %1101
    %v1103 = vmul.f32 %v1099, %v37
    %v1104 = vmul.f32 %v1102, %v37
    %v1105 = vadd.f32 %v1103, 1e-06
    %v1106 = vadd.f32 %v1104, 1e-06
    %v1107 = vrsqrt.pop %v1105
    %v1108 = vrsqrt.pop %v1106
    %v1109 = vmul.f32 %v1093, %v1107
    %v1110 = vmul.f32 %v1094, %v1108
    %v1111 = vlaneseq
    %v1112 = vshrl.u32 %v1111, 7
    %v1113 = vsub.s32 4, %v1112
    %v1114 = vrot.slane %v29, %v1113
    %v1115 = vmul.f32 %v1109, %v1114
    %v1116 = vmul.f32 %v1110, %v1114
    %v1117 = vlaneseq
    %v1118 = vshrl.u32 %v1117, 7
    %v1119 = vsub.s32 5, %v1118
    %v1120 = vrot.slane %v29, %v1119
    %v1121 = vadd.f32 %v1115, %v1120
    %v1122 = vadd.f32 %v1116, %v1120
    %v1123 = vld [vmem:[%s3] sm:$0xff]
    %v1124 = vld [vmem:[%s3 + $0x8] sm:$0xff]
    %v1125 = vld [vmem:[%s3 + $0x10] sm:$0xff]
    %v1126 = vld [vmem:[%s3 + $0x18] sm:$0xff]
    %v1127 = vlaneseq
    %v1128 = vshrl.u32 %v1127, 7
    %v1129 = vsub.s32 1, %v1128
    %v1130 = vrot.slane %v29, %v1129
    %v1132 = vsel %vm30, %v1121, 0
    %v1135 = vsel %vm30, %v1122, 0
    %1137 = vmatprep.subr.mxu0 0.0
    %1138 = vmatpush1.msra.mxu0 %v1123
    %1139 = vmatprep.subr.mxu0 0.0
    %1140 = vmatpush1.msra.mxu0 %v1124
    %1141 = vmatprep.subr.mxu0 0.0
    %1142 = vmatpush1.msra.mxu0 %v1125
    %1143 = vmatprep.subr.mxu0 0.0
    %1144 = vmatpush1.msra.mxu0 %v1126
    %1145 = vmatprep.subr.mxu0 0.0
    %1146 = vmatpush1.msra.mxu0 0.0
    %1147 = vmatprep.subr.mxu0 0.0
    %1148 = vmatpush1.msra.mxu0 0.0
    %1149 = vmatprep.subr.mxu0 0.0
    %1150 = vmatpush1.msra.mxu0 0.0
    %1151 = vmatprep.subr.mxu0 0.0
    %1152 = vmatpush1.msra.mxu0 0.0
    %1153 = vmatprep.subr.mxu0 0.0
    %1154 = vmatpush1.msra.mxu0 0.0
    %1155 = vmatprep.subr.mxu0 0.0
    %1156 = vmatpush1.msra.mxu0 0.0
    %1157 = vmatprep.subr.mxu0 0.0
    %1158 = vmatpush1.msra.mxu0 0.0
    %1159 = vmatprep.subr.mxu0 0.0
    %1160 = vmatpush1.msra.mxu0 0.0
    %1161 = vmatprep.subr.mxu0 0.0
    %1162 = vmatpush1.msra.mxu0 0.0
    %1163 = vmatprep.subr.mxu0 0.0
    %1164 = vmatpush1.msra.mxu0 0.0
    %1165 = vmatprep.subr.mxu0 0.0
    %1166 = vmatpush1.msra.mxu0 0.0
    %1167 = vmatprep.subr.mxu0 0.0
    %1168 = vmatpush1.msra.mxu0 0.0
    %1169 = vmatprep.subr.mxu0 0.0
    %1170 = vmatpush1.msra.mxu0 0.0
    %1171 = vmatprep.subr.mxu0 0.0
    %1172 = vmatpush1.msra.mxu0 0.0
    %1173 = vmatprep.subr.mxu0 0.0
    %1174 = vmatpush1.msra.mxu0 0.0
    %1175 = vmatprep.subr.mxu0 0.0
    %1176 = vmatpush1.msra.mxu0 0.0
    %1177 = vmatprep.subr.mxu0 0.0
    %1178 = vmatpush1.msra.mxu0 0.0
    %1179 = vmatprep.subr.mxu0 0.0
    %1180 = vmatpush1.msra.mxu0 0.0
    %1181 = vmatprep.subr.mxu0 0.0
    %1182 = vmatpush1.msra.mxu0 0.0
    %1183 = vmatprep.subr.mxu0 0.0
    %1184 = vmatpush1.msra.mxu0 0.0
    %1185 = vmatprep.subr.mxu0 0.0
    %1186 = vmatpush1.msra.mxu0 0.0
    %1187 = vmatprep.subr.mxu0 0.0
    %1188 = vmatpush1.msra.mxu0 0.0
    %1189 = vmatprep.subr.mxu0 0.0
    %1190 = vmatpush1.msra.mxu0 0.0
    %1191 = vmatprep.subr.mxu0 0.0
    %1192 = vmatpush1.msra.mxu0 0.0
    %1193 = vmatprep.subr.mxu0 0.0
    %1194 = vmatpush1.msra.mxu0 0.0
    %1195 = vmatprep.subr.mxu0 0.0
    %1196 = vmatpush1.msra.mxu0 0.0
    %1197 = vmatprep.subr.mxu0 0.0
    %1198 = vmatpush1.msra.mxu0 0.0
    %1199 = vmatprep.subr.mxu0 0.0
    %1200 = vmatpush1.msra.mxu0 0.0
    %1201 = vmatprep.mubr.f32.mxu0 0.0
    %1202 = vmatmul.mubr.f32.gmra.mrb[0].mxu0 %v1132
    %v1203 = vpop.f32.mrb[0].mxu0
    %v1204 = vadd.f32 %v1130, %v1203
    %v1205 = vpop.f32.mrb[0].mxu0
    %1206 = vmatprep.mubr.f32.mxu0 0.0
    %1207 = vmatmul.mubr.f32.gmra.mrb[0].mxu0 %v1135
    %v1208 = vpop.f32.mrb[0].mxu0
    %v1209 = vadd.f32 %v1130, %v1208
    %v1210 = vpop.f32.mrb[0].mxu0
    %1211 = vdwg.mxu0
    %v1212 = vmul.f32 %v1204, 0.5
    %v1213 = vmul.f32 %v1209, 0.5
    %v1214 = vmul.f32 %v1204, 0.70710677
    %v1215 = vmul.f32 %v1209, 0.70710677
    %v1216 = vand.u32 2147483647, %v1214
    %v1217 = vand.u32 2147483647, %v1215
    %v1218 = vmul.f32 %v1216, 0.3275911
    %v1219 = vmul.f32 %v1217, 0.3275911
    %v1220 = vadd.f32 %v1218, 1.0
    %v1221 = vadd.f32 %v1219, 1.0
    %v1222 = vrcp.pop %v1220
    %v1223 = vmul.f32 1.0, %v1222
    %v1224 = vrcp.pop %v1221
    %v1225 = vmul.f32 1.0, %v1224
    %v1226 = vmul.f32 %v1223, 1.0614054
    %v1227 = vmul.f32 %v1225, 1.0614054
    %v1228 = vadd.f32 %v1226, -1.4531521
    %v1229 = vadd.f32 %v1227, -1.4531521
    %v1230 = vmul.f32 %v1228, %v1223
    %v1231 = vmul.f32 %v1229, %v1225
    %v1232 = vadd.f32 %v1230, 1.4214138
    %v1233 = vadd.f32 %v1231, 1.4214138
    %v1234 = vmul.f32 %v1232, %v1223
    %v1235 = vmul.f32 %v1233, %v1225
    %v1236 = vadd.f32 %v1234, -0.28449672
    %v1237 = vadd.f32 %v1235, -0.28449672
    %v1238 = vmul.f32 %v1236, %v1223
    %v1239 = vmul.f32 %v1237, %v1225
    %v1240 = vadd.f32 %v1238, 0.2548296
    %v1241 = vadd.f32 %v1239, 0.2548296
    %v1242 = vmul.f32 %v1240, %v1223
    %v1243 = vmul.f32 %v1241, %v1225
    %v1244 = vsub.f32 0.0, %v1216
    %v1245 = vsub.f32 0.0, %v1217
    %v1246 = vmul.f32 %v1244, %v1216
    %v1247 = vmul.f32 %v1245, %v1217
    %v1248 = vmul.f32 %v1246, 1.442695
    %v1249 = vpow.pop %v1248
    %v1250 = vmul.f32 %v1247, 1.442695
    %v1251 = vpow.pop %v1250
    %v1252 = vmul.f32 %v1242, %v1249
    %v1253 = vmul.f32 %v1243, %v1251
    %v1254 = vsub.f32 1.0, %v1252
    %v1255 = vsub.f32 1.0, %v1253
    %vm1256 = vcmp.ge.f32.partialorder %v1214, 0.0
    %vm1257 = vcmp.ge.f32.partialorder %v1215, 0.0
    %v1258 = vsub.f32 0.0, %v1254
    %v1259 = vsub.f32 0.0, %v1255
    %v1260 = vsel %vm1256, %v1254, %v1258
    %v1261 = vsel %vm1257, %v1255, %v1259
    %v1262 = vadd.f32 %v1260, 1.0
    %v1263 = vadd.f32 %v1261, 1.0
    %v1264 = vmul.f32 %v1212, %v1262
    %v1265 = vmul.f32 %v1213, %v1263
    %v1266 = vld [vmem:[%s4] sm:$0xff]
    %v1267 = vld [vmem:[%s4 + $0x8] sm:$0xff]
    %v1268 = vld [vmem:[%s4 + $0x10] sm:$0xff]
    %v1269 = vld [vmem:[%s4 + $0x18] sm:$0xff]
    %v1270 = vld [vmem:[%s4 + $0x20] sm:$0xff]
    %v1271 = vld [vmem:[%s4 + $0x28] sm:$0xff]
    %v1272 = vld [vmem:[%s4 + $0x30] sm:$0xff]
    %v1273 = vld [vmem:[%s4 + $0x38] sm:$0xff]
    %v1274 = vld [vmem:[%s4 + $0x40] sm:$0xff]
    %v1275 = vld [vmem:[%s4 + $0x48] sm:$0xff]
    %v1276 = vld [vmem:[%s4 + $0x50] sm:$0xff]
    %v1277 = vld [vmem:[%s4 + $0x58] sm:$0xff]
    %v1278 = vld [vmem:[%s4 + $0x60] sm:$0xff]
    %v1279 = vld [vmem:[%s4 + $0x68] sm:$0xff]
    %v1280 = vld [vmem:[%s4 + $0x70] sm:$0xff]
    %v1281 = vld [vmem:[%s4 + $0x78] sm:$0xff]
    %v1282 = vlaneseq
    %v1283 = vshrl.u32 %v1282, 7
    %v1284 = vsub.s32 7, %v1283
    %v1285 = vrot.slane %v29, %v1284
    %1286 = vmatprep.subr.mxu0 0.0
    %1287 = vmatpush1.msra.mxu0 %v1266
    %1288 = vmatprep.subr.mxu0 0.0
    %1289 = vmatpush1.msra.mxu0 %v1267
    %1290 = vmatprep.subr.mxu0 0.0
    %1291 = vmatpush1.msra.mxu0 %v1268
    %1292 = vmatprep.subr.mxu0 0.0
    %1293 = vmatpush1.msra.mxu0 %v1269
    %1294 = vmatprep.subr.mxu0 0.0
    %1295 = vmatpush1.msra.mxu0 %v1270
    %1296 = vmatprep.subr.mxu0 0.0
    %1297 = vmatpush1.msra.mxu0 %v1271
    %1298 = vmatprep.subr.mxu0 0.0
    %1299 = vmatpush1.msra.mxu0 %v1272
    %1300 = vmatprep.subr.mxu0 0.0
    %1301 = vmatpush1.msra.mxu0 %v1273
    %1302 = vmatprep.subr.mxu0 0.0
    %1303 = vmatpush1.msra.mxu0 %v1274
    %1304 = vmatprep.subr.mxu0 0.0
    %1305 = vmatpush1.msra.mxu0 %v1275
    %1306 = vmatprep.subr.mxu0 0.0
    %1307 = vmatpush1.msra.mxu0 %v1276
    %1308 = vmatprep.subr.mxu0 0.0
    %1309 = vmatpush1.msra.mxu0 %v1277
    %1310 = vmatprep.subr.mxu0 0.0
    %1311 = vmatpush1.msra.mxu0 %v1278
    %1312 = vmatprep.subr.mxu0 0.0
    %1313 = vmatpush1.msra.mxu0 %v1279
    %1314 = vmatprep.subr.mxu0 0.0
    %1315 = vmatpush1.msra.mxu0 %v1280
    %1316 = vmatprep.subr.mxu0 0.0
    %1317 = vmatpush1.msra.mxu0 %v1281
    %1318 = vmatprep.subr.mxu0 0.0
    %1319 = vmatpush1.msra.mxu0 0.0
    %1320 = vmatprep.subr.mxu0 0.0
    %1321 = vmatpush1.msra.mxu0 0.0
    %1322 = vmatprep.subr.mxu0 0.0
    %1323 = vmatpush1.msra.mxu0 0.0
    %1324 = vmatprep.subr.mxu0 0.0
    %1325 = vmatpush1.msra.mxu0 0.0
    %1326 = vmatprep.subr.mxu0 0.0
    %1327 = vmatpush1.msra.mxu0 0.0
    %1328 = vmatprep.subr.mxu0 0.0
    %1329 = vmatpush1.msra.mxu0 0.0
    %1330 = vmatprep.subr.mxu0 0.0
    %1331 = vmatpush1.msra.mxu0 0.0
    %1332 = vmatprep.subr.mxu0 0.0
    %1333 = vmatpush1.msra.mxu0 0.0
    %1334 = vmatprep.subr.mxu0 0.0
    %1335 = vmatpush1.msra.mxu0 0.0
    %1336 = vmatprep.subr.mxu0 0.0
    %1337 = vmatpush1.msra.mxu0 0.0
    %1338 = vmatprep.subr.mxu0 0.0
    %1339 = vmatpush1.msra.mxu0 0.0
    %1340 = vmatprep.subr.mxu0 0.0
    %1341 = vmatpush1.msra.mxu0 0.0
    %1342 = vmatprep.subr.mxu0 0.0
    %1343 = vmatpush1.msra.mxu0 0.0
    %1344 = vmatprep.subr.mxu0 0.0
    %1345 = vmatpush1.msra.mxu0 0.0
    %1346 = vmatprep.subr.mxu0 0.0
    %1347 = vmatpush1.msra.mxu0 0.0
    %1348 = vmatprep.subr.mxu0 0.0
    %1349 = vmatpush1.msra.mxu0 0.0
    %1350 = vmatprep.mubr.f32.mxu0 0.0
    %1351 = vmatmul.mubr.f32.gmra.mrb[0].mxu0 %v1264
    %v1352 = vpop.f32.mrb[0].mxu0
    %v1353 = vadd.f32 %v1285, %v1352
    %v1354 = vpop.f32.mrb[0].mxu0
    %1355 = vmatprep.mubr.f32.mxu0 0.0
    %1356 = vmatmul.mubr.f32.gmra.mrb[0].mxu0 %v1265
    %v1357 = vpop.f32.mrb[0].mxu0
    %v1358 = vadd.f32 %v1285, %v1357
    %v1359 = vpop.f32.mrb[0].mxu0
    %1360 = vdwg.mxu0
    %v1361 = vadd.f32 %v1083, %v1353
    %v1362 = vadd.f32 %v1084, %v1358
    %1363 = vst.msk [vmem:[#allocation2] sm:$0xff] %vm30, %v1361
    %1364 = vst.msk [vmem:[#allocation2 + $0x8] sm:$0xff] %vm30, %v1362
    // Predicated region
    $region30: #{vit_block.1} parent=1 // pred_check
      _
    $region31: #{vit_block.1} parent=1 // pred_check_branch
      %1366 = sbr.rel (0) target = $region33
    $region32: #{vit_block.1} parent=1 // pred_region
      %s1368 = ssub.s32 256, 256
      %1369 = vsyncadd [#allocation3], %s1368
      %s1370 = sshll.u32 [#allocation2], 4
      %s1371 = int_to_ptr.vmem [resolvable:$true] %s1370
      %1376 = dma.vmem_to_hbm [thread:$0]  %s1371, 256, %s7, [#allocation3], 128, 128, 8
    $region33: #{vit_block.1} parent=1 // pred_fallthru
      _
    // Predicated region
    $region34: #{vit_block.1} parent=1 // pred_check
      _
    $region35: #{vit_block.1} parent=1 // pred_check_branch
      %1378 = sbr.rel (0) target = $region37
    $region36: #{vit_block.1} parent=1 // pred_region
      %1379 = dma.done [#allocation3], 256
    $region37: #{vit_block.1} parent=1 // pred_fallthru
      _
    %1380 = vsyncpa [#allocation3], 1

</llo_original>
